<compile_context>
chip_gen: v6e
topology: v6e:2x2x1
jax: 0.10.0
libtpu: 0.0.40
codegen_flags: <defaults>
</compile_context>

<pallas_src>
import functools
import math

import jax
import jax.numpy as jnp
import numpy as np
from jax import lax
from jax.experimental import pallas as pl
from jax.experimental.pallas import tpu as pltpu


@functools.lru_cache(maxsize=None)
def get_positional_encoding(max_seq_len: int, embed_dim: int) -> np.ndarray:
    """Exact port of the reference numpy positional encoding (host-cached)."""
    pe = np.array(
        [
            [pos / np.power(10000, 2 * i / embed_dim) for i in range(embed_dim)]
            if pos != 0
            else np.zeros(embed_dim)
            for pos in range(max_seq_len)
        ]
    )
    pe[1:, 0::2] = np.sin(pe[1:, 0::2])
    pe[1:, 1::2] = np.cos(pe[1:, 1::2])
    return pe.astype(np.float32)


def _batch_block(b: int) -> int:
    """Largest divisor of b keeping the grid at least 2 wide (v7x dual-TC)."""
    target = max(1, b // 2)
    for d in range(target, 0, -1):
        if b % d == 0:
            return d
    return 1


def sa_attention_kernel(
    x_ref,       # (bb, N, C)   raw tokens (PE added in-kernel)
    pe_ref,      # (N, C)       sinusoidal positional encoding
    wqkv_ref,    # (C, 3*Di)    fused q|k|v projection weight (in, out)
    bqkv_ref,    # (1, 3*Di)    fused q|k|v bias
    wo_ref,      # (Di, C)      out projection weight (in, out)
    bo_ref,      # (1, C)       out projection bias
    out_ref,     # (bb, N, C)
    *,
    num_heads: int,
):
    bb, n, c = x_ref.shape
    d_int = wqkv_ref.shape[1] // 3
    dh = d_int // num_heads
    scale = 1.0 / math.sqrt(dh)

    # Fused PE add (VPU slack) + flatten the batch block so the QKV projection
    # is a single sublane/lane-dense MXU matmul.
    x = (x_ref[...] + pe_ref[...]).reshape(bb * n, c)

    # One fused Q|K|V projection: (bb*N, C) @ (C, 3*Di), f32 accumulation.
    qkv = (
        jnp.dot(x, wqkv_ref[...], preferred_element_type=jnp.float32)
        + bqkv_ref[...]
    )

    bo = bo_ref[...]

    for bi in range(bb):
        row0 = bi * n
        qkv_b = qkv[row0:row0 + n, :]                       # sublane-aligned slice
        q = qkv_b[:, 0 * d_int:1 * d_int] * scale           # scale folded into q
        k = qkv_b[:, 1 * d_int:2 * d_int]
        v = qkv_b[:, 2 * d_int:3 * d_int]

        acc = None
        for h in range(num_heads):
            lo, hi = h * dh, (h + 1) * dh
            qh = q[:, lo:hi]
            kh = k[:, lo:hi]
            vh = v[:, lo:hi]

            # Q @ K^T without materializing K^T (contract the last dims).
            s = lax.dot_general(
                qh, kh, (((1,), (1,)), ((), ())),
                preferred_element_type=jnp.float32,
            )                                                # (N, N)
            s = s - jnp.max(s, axis=-1, keepdims=True)
            p = jnp.exp(s)
            # EUP approx reciprocal instead of a VALU divide.
            p = p * pl.reciprocal(
                jnp.sum(p, axis=-1, keepdims=True), approx=True
            )

            oh = jnp.dot(
                p.astype(vh.dtype), vh, preferred_element_type=jnp.float32
            )                                                # (N, dh)
            # Fold the output projection into the head loop: no concat; the
            # wo[lo:hi, :] slice is a cheap sublane-aligned row slice.
            part = jnp.dot(
                oh.astype(wo_ref.dtype), wo_ref[lo:hi, :],
                preferred_element_type=jnp.float32,
            )                                                # (N, C)
            acc = part if acc is None else acc + part

        out_ref[bi] = (acc + bo).astype(out_ref.dtype)


def sa_forward(x_nchw, params, num_heads: int, *, param_dtype=jnp.float32):
    """SA.forward: NCHW in, NCHW out.  PE add + attention run inside the kernel."""
    b, c, h, w = x_nchw.shape
    n = h * w

    wq, bq, wk, bk, wv, bv, wo, bo = params
    d_int = wq.shape[1]
    c_out = wo.shape[1]
    assert d_int % num_heads == 0, "num_heads must divide the internal dim"

    # b c h w -> b (h w) c
    x = jnp.transpose(x_nchw, (0, 2, 3, 1)).reshape(b, n, c).astype(param_dtype)

    # Host-cached sinusoidal PE; the add happens inside the kernel.
    pe = jnp.asarray(get_positional_encoding(n, c), dtype=param_dtype)

    # Fuse Q/K/V weights & biases into single lane-dense operands.
    w_qkv = jnp.concatenate([wq, wk, wv], axis=1).astype(param_dtype)   # (C, 3*Di)
    b_qkv = jnp.concatenate([bq, bk, bv], axis=1).astype(param_dtype)   # (1, 3*Di)
    wo_p = wo.astype(param_dtype)
    bo_p = bo.astype(param_dtype)

    # Batch blocking: amortize per-grid-step overhead while keeping >= 2
    # parallel grid steps for v7x's two TensorCores.
    bb = _batch_block(b)
    nb = b // bb

    kernel = functools.partial(sa_attention_kernel, num_heads=num_heads)
    const2d = lambda shape: pl.BlockSpec(shape, lambda i: (0, 0))

    out = pl.pallas_call(
        kernel,
        out_shape=jax.ShapeDtypeStruct((b, n, c_out), jnp.float32),
        grid=(nb,),
        in_specs=[
            pl.BlockSpec((bb, n, c), lambda i: (i, 0, 0)),
            const2d((n, c)),
            const2d((c, 3 * d_int)),
            const2d((1, 3 * d_int)),
            const2d((d_int, c_out)),
            const2d((1, c_out)),
        ],
        out_specs=pl.BlockSpec((bb, n, c_out), lambda i: (i, 0, 0)),
        compiler_params=pltpu.CompilerParams(
            dimension_semantics=("parallel",)
        ),
    )(x, pe, w_qkv, b_qkv, wo_p, bo_p)

    # b (h w) c -> b c h w
    return jnp.transpose(out.reshape(b, h, w, c_out), (0, 3, 1, 2))


def sa_reference(x_nchw, params, num_heads: int):
    """Pure-JAX reference mirroring the PyTorch module (for verification)."""
    b, c, h, w = x_nchw.shape
    n = h * w
    x = jnp.transpose(x_nchw, (0, 2, 3, 1)).reshape(b, n, c)
    x = x + jnp.asarray(get_positional_encoding(n, c))[None]

    wq, bq, wk, bk, wv, bv, wo, bo = params
    q = x @ wq + bq
    k = x @ wk + bk
    v = x @ wv + bv
    d_int = q.shape[-1]
    dh = d_int // num_heads

    def split(t):  # (b, n, d) -> (b, H, n, dh)
        return jnp.transpose(t.reshape(b, n, num_heads, dh), (0, 2, 1, 3))

    qh, kh, vh = split(q), split(k), split(v)
    attn = jnp.einsum("bhqd,bhkd->bhqk", qh, kh) / math.sqrt(dh)
    attn = jax.nn.softmax(attn, axis=-1)
    o = jnp.einsum("bhqk,bhkd->bhqd", attn, vh)
    o = jnp.transpose(o, (0, 2, 1, 3)).reshape(b, n, d_int)
    o = o @ wo + bo
    return jnp.transpose(o.reshape(b, h, w, -1), (0, 3, 1, 2))


def init_params(key, embedding_dim: int, downsample_rate: int = 1):
    """Deterministic synthetic parameters (nn.Linear shapes, pre-transposed)."""
    d_int = embedding_dim // downsample_rate
    keys = jax.random.split(key, 8)
    scale_in = 1.0 / math.sqrt(embedding_dim)
    scale_int = 1.0 / math.sqrt(d_int)
    wq = jax.random.uniform(keys[0], (embedding_dim, d_int), jnp.float32, -scale_in, scale_in)
    bq = jax.random.uniform(keys[1], (1, d_int), jnp.float32, -scale_in, scale_in)
    wk = jax.random.uniform(keys[2], (embedding_dim, d_int), jnp.float32, -scale_in, scale_in)
    bk = jax.random.uniform(keys[3], (1, d_int), jnp.float32, -scale_in, scale_in)
    wv = jax.random.uniform(keys[4], (embedding_dim, d_int), jnp.float32, -scale_in, scale_in)
    bv = jax.random.uniform(keys[5], (1, d_int), jnp.float32, -scale_in, scale_in)
    wo = jax.random.uniform(keys[6], (d_int, embedding_dim), jnp.float32, -scale_int, scale_int)
    bo = jax.random.uniform(keys[7], (1, embedding_dim), jnp.float32, -scale_int, scale_int)
    return (wq, bq, wk, bk, wv, bv, wo, bo)


if __name__ == "__main__":
    # Small shapes consistent with the module: b=2, c=embedding_dim=32, h=w=8.
    B, C, H, W = 2, 32, 8, 8
    NUM_HEADS = 4
    DOWNSAMPLE_RATE = 1

    key = jax.random.PRNGKey(0)
    k_x, k_p = jax.random.split(key)
    x = jax.random.normal(k_x, (B, C, H, W), dtype=jnp.float32)
    params = init_params(k_p, C, DOWNSAMPLE_RATE)

    out = jax.block_until_ready(sa_forward(x, params, NUM_HEADS))
    ref = jax.block_until_ready(sa_reference(x, params, NUM_HEADS))

    # Tolerance accounts for the EUP approx-reciprocal softmax normalization.
    np.testing.assert_allclose(np.asarray(out), np.asarray(ref), rtol=2e-3, atol=2e-3)
    assert out.shape == (B, C, H, W)

    print("KERNEL_OK")
</pallas_src>

<mosaic_0001>
module attributes {stable_mosaic.version = 11 : i64} {
  func.func @sa_attention_kernel(%arg0: i32, %arg1: memref<1x64x32xf32, #tpu.memory_space<vmem>>, %arg2: memref<64x32xf32, #tpu.memory_space<vmem>>, %arg3: memref<32x96xf32, #tpu.memory_space<vmem>>, %arg4: memref<1x96xf32, #tpu.memory_space<vmem>>, %arg5: memref<32x32xf32, #tpu.memory_space<vmem>>, %arg6: memref<1x32xf32, #tpu.memory_space<vmem>>, %arg7: memref<1x64x32xf32, #tpu.memory_space<vmem>>) attributes {dimension_semantics = [#tpu.dimension_semantics<parallel>], iteration_bounds = array<i64: 2>, scalar_prefetch = 0 : i64, scratch_operands = 0 : i64, tpu.core_type = #tpu.core_type<tc>, window_params = [{transform_indices = @transform_0, window_bounds = array<i64: 1, 64, 32>}, {pipeline_mode = #tpu.pipeline_mode<synchronous>, transform_indices = @transform_1, window_bounds = array<i64: 64, 32>}, {pipeline_mode = #tpu.pipeline_mode<synchronous>, transform_indices = @transform_2, window_bounds = array<i64: 32, 96>}, {pipeline_mode = #tpu.pipeline_mode<synchronous>, transform_indices = @transform_3, window_bounds = array<i64: 1, 96>}, {pipeline_mode = #tpu.pipeline_mode<synchronous>, transform_indices = @transform_4, window_bounds = array<i64: 32, 32>}, {pipeline_mode = #tpu.pipeline_mode<synchronous>, transform_indices = @transform_5, window_bounds = array<i64: 1, 32>}, {transform_indices = @transform_6, window_bounds = array<i64: 1, 64, 32>}]} {
    %c0 = arith.constant 0 : index
    %c0_0 = arith.constant 0 : index
    %c0_1 = arith.constant 0 : index
    %0 = vector.load %arg1[%c0, %c0_0, %c0_1] : memref<1x64x32xf32, #tpu.memory_space<vmem>>, vector<1x64x32xf32>
    %c0_2 = arith.constant 0 : index
    %c0_3 = arith.constant 0 : index
    %1 = vector.load %arg2[%c0_2, %c0_3] : memref<64x32xf32, #tpu.memory_space<vmem>>, vector<64x32xf32>
    %2 = vector.shape_cast %1 : vector<64x32xf32> to vector<1x64x32xf32>
    %3 = arith.addf %0, %2 : vector<1x64x32xf32>
    %4 = vector.shape_cast %3 : vector<1x64x32xf32> to vector<64x32xf32>
    %c0_4 = arith.constant 0 : index
    %c0_5 = arith.constant 0 : index
    %5 = vector.load %arg3[%c0_4, %c0_5] : memref<32x96xf32, #tpu.memory_space<vmem>>, vector<32x96xf32>
    %cst = arith.constant dense<0.000000e+00> : vector<64x96xf32>
    %6 = tpu.matmul %4, %5, %cst {dimension_numbers = #tpu.dot_dimension_numbers<[1], [0], [0], [1], [0, 0, 1, 1], [], []>} : vector<64x32xf32>, vector<32x96xf32>, vector<64x96xf32> -> vector<64x96xf32>
    %c0_6 = arith.constant 0 : index
    %c0_7 = arith.constant 0 : index
    %7 = vector.load %arg4[%c0_6, %c0_7] : memref<1x96xf32, #tpu.memory_space<vmem>>, vector<1x96xf32>
    %8 = vector.broadcast %7 : vector<1x96xf32> to vector<64x96xf32>
    %9 = arith.addf %6, %8 : vector<64x96xf32>
    %c0_8 = arith.constant 0 : index
    %c0_9 = arith.constant 0 : index
    %10 = vector.load %arg6[%c0_8, %c0_9] : memref<1x32xf32, #tpu.memory_space<vmem>>, vector<1x32xf32>
    %11 = vector.extract_strided_slice %9 {offsets = [0, 0], sizes = [64, 32], strides = [1, 1]} : vector<64x96xf32> to vector<64x32xf32>
    %cst_10 = arith.constant 0.353553385 : f32
    %12 = vector.broadcast %cst_10 : f32 to vector<64x32xf32>
    %13 = arith.mulf %11, %12 : vector<64x32xf32>
    %14 = vector.extract_strided_slice %9 {offsets = [0, 32], sizes = [64, 32], strides = [1, 1]} : vector<64x96xf32> to vector<64x32xf32>
    %15 = vector.extract_strided_slice %9 {offsets = [0, 64], sizes = [64, 32], strides = [1, 1]} : vector<64x96xf32> to vector<64x32xf32>
    %16 = vector.extract_strided_slice %13 {offsets = [0, 0], sizes = [64, 8], strides = [1, 1]} : vector<64x32xf32> to vector<64x8xf32>
    %17 = vector.extract_strided_slice %14 {offsets = [0, 0], sizes = [64, 8], strides = [1, 1]} : vector<64x32xf32> to vector<64x8xf32>
    %18 = vector.extract_strided_slice %15 {offsets = [0, 0], sizes = [64, 8], strides = [1, 1]} : vector<64x32xf32> to vector<64x8xf32>
    %cst_11 = arith.constant dense<0.000000e+00> : vector<64x64xf32>
    %19 = tpu.matmul %16, %17, %cst_11 {dimension_numbers = #tpu.dot_dimension_numbers<[1], [1], [0], [0], [0, 0, 1, 0], [], []>} : vector<64x8xf32>, vector<64x8xf32>, vector<64x64xf32> -> vector<64x64xf32>
    %cst_12 = arith.constant dense<0xFF800000> : vector<64xf32>
    %20 = vector.multi_reduction <maximumf>, %19, %cst_12 [1] : vector<64x64xf32> to vector<64xf32>
    %21 = vector.shape_cast %20 : vector<64xf32> to vector<64x1xf32>
    %22 = vector.broadcast %21 : vector<64x1xf32> to vector<64x64xf32>
    %23 = arith.subf %19, %22 : vector<64x64xf32>
    %24 = math.exp %23 : vector<64x64xf32>
    %cst_13 = arith.constant dense<0.000000e+00> : vector<64xf32>
    %25 = vector.multi_reduction <add>, %24, %cst_13 [1] : vector<64x64xf32> to vector<64xf32>
    %26 = vector.shape_cast %25 : vector<64xf32> to vector<64x1xf32>
    %27 = tpu.reciprocal %26 {approx = true} : vector<64x1xf32> -> vector<64x1xf32>
    %28 = vector.broadcast %27 : vector<64x1xf32> to vector<64x64xf32>
    %29 = arith.mulf %24, %28 : vector<64x64xf32>
    %cst_14 = arith.constant dense<0.000000e+00> : vector<64x8xf32>
    %30 = tpu.matmul %29, %18, %cst_14 {dimension_numbers = #tpu.dot_dimension_numbers<[1], [0], [0], [1], [0, 0, 1, 1], [], []>} : vector<64x64xf32>, vector<64x8xf32>, vector<64x8xf32> -> vector<64x8xf32>
    %c0_15 = arith.constant 0 : index
    %c0_16 = arith.constant 0 : index
    %31 = vector.load %arg5[%c0_15, %c0_16] : memref<32x32xf32, #tpu.memory_space<vmem>>, vector<8x32xf32>
    %cst_17 = arith.constant dense<0.000000e+00> : vector<64x32xf32>
    %32 = tpu.matmul %30, %31, %cst_17 {dimension_numbers = #tpu.dot_dimension_numbers<[1], [0], [0], [1], [0, 0, 1, 1], [], []>} : vector<64x8xf32>, vector<8x32xf32>, vector<64x32xf32> -> vector<64x32xf32>
    %33 = vector.extract_strided_slice %13 {offsets = [0, 8], sizes = [64, 8], strides = [1, 1]} : vector<64x32xf32> to vector<64x8xf32>
    %34 = vector.extract_strided_slice %14 {offsets = [0, 8], sizes = [64, 8], strides = [1, 1]} : vector<64x32xf32> to vector<64x8xf32>
    %35 = vector.extract_strided_slice %15 {offsets = [0, 8], sizes = [64, 8], strides = [1, 1]} : vector<64x32xf32> to vector<64x8xf32>
    %cst_18 = arith.constant dense<0.000000e+00> : vector<64x64xf32>
    %36 = tpu.matmul %33, %34, %cst_18 {dimension_numbers = #tpu.dot_dimension_numbers<[1], [1], [0], [0], [0, 0, 1, 0], [], []>} : vector<64x8xf32>, vector<64x8xf32>, vector<64x64xf32> -> vector<64x64xf32>
    %cst_19 = arith.constant dense<0xFF800000> : vector<64xf32>
    %37 = vector.multi_reduction <maximumf>, %36, %cst_19 [1] : vector<64x64xf32> to vector<64xf32>
    %38 = vector.shape_cast %37 : vector<64xf32> to vector<64x1xf32>
    %39 = vector.broadcast %38 : vector<64x1xf32> to vector<64x64xf32>
    %40 = arith.subf %36, %39 : vector<64x64xf32>
    %41 = math.exp %40 : vector<64x64xf32>
    %cst_20 = arith.constant dense<0.000000e+00> : vector<64xf32>
    %42 = vector.multi_reduction <add>, %41, %cst_20 [1] : vector<64x64xf32> to vector<64xf32>
    %43 = vector.shape_cast %42 : vector<64xf32> to vector<64x1xf32>
    %44 = tpu.reciprocal %43 {approx = true} : vector<64x1xf32> -> vector<64x1xf32>
    %45 = vector.broadcast %44 : vector<64x1xf32> to vector<64x64xf32>
    %46 = arith.mulf %41, %45 : vector<64x64xf32>
    %cst_21 = arith.constant dense<0.000000e+00> : vector<64x8xf32>
    %47 = tpu.matmul %46, %35, %cst_21 {dimension_numbers = #tpu.dot_dimension_numbers<[1], [0], [0], [1], [0, 0, 1, 1], [], []>} : vector<64x64xf32>, vector<64x8xf32>, vector<64x8xf32> -> vector<64x8xf32>
    %c8 = arith.constant 8 : index
    %c0_22 = arith.constant 0 : index
    %48 = vector.load %arg5[%c8, %c0_22] : memref<32x32xf32, #tpu.memory_space<vmem>>, vector<8x32xf32>
    %cst_23 = arith.constant dense<0.000000e+00> : vector<64x32xf32>
    %49 = tpu.matmul %47, %48, %cst_23 {dimension_numbers = #tpu.dot_dimension_numbers<[1], [0], [0], [1], [0, 0, 1, 1], [], []>} : vector<64x8xf32>, vector<8x32xf32>, vector<64x32xf32> -> vector<64x32xf32>
    %50 = arith.addf %32, %49 : vector<64x32xf32>
    %51 = vector.extract_strided_slice %13 {offsets = [0, 16], sizes = [64, 8], strides = [1, 1]} : vector<64x32xf32> to vector<64x8xf32>
    %52 = vector.extract_strided_slice %14 {offsets = [0, 16], sizes = [64, 8], strides = [1, 1]} : vector<64x32xf32> to vector<64x8xf32>
    %53 = vector.extract_strided_slice %15 {offsets = [0, 16], sizes = [64, 8], strides = [1, 1]} : vector<64x32xf32> to vector<64x8xf32>
    %cst_24 = arith.constant dense<0.000000e+00> : vector<64x64xf32>
    %54 = tpu.matmul %51, %52, %cst_24 {dimension_numbers = #tpu.dot_dimension_numbers<[1], [1], [0], [0], [0, 0, 1, 0], [], []>} : vector<64x8xf32>, vector<64x8xf32>, vector<64x64xf32> -> vector<64x64xf32>
    %cst_25 = arith.constant dense<0xFF800000> : vector<64xf32>
    %55 = vector.multi_reduction <maximumf>, %54, %cst_25 [1] : vector<64x64xf32> to vector<64xf32>
    %56 = vector.shape_cast %55 : vector<64xf32> to vector<64x1xf32>
    %57 = vector.broadcast %56 : vector<64x1xf32> to vector<64x64xf32>
    %58 = arith.subf %54, %57 : vector<64x64xf32>
    %59 = math.exp %58 : vector<64x64xf32>
    %cst_26 = arith.constant dense<0.000000e+00> : vector<64xf32>
    %60 = vector.multi_reduction <add>, %59, %cst_26 [1] : vector<64x64xf32> to vector<64xf32>
    %61 = vector.shape_cast %60 : vector<64xf32> to vector<64x1xf32>
    %62 = tpu.reciprocal %61 {approx = true} : vector<64x1xf32> -> vector<64x1xf32>
    %63 = vector.broadcast %62 : vector<64x1xf32> to vector<64x64xf32>
    %64 = arith.mulf %59, %63 : vector<64x64xf32>
    %cst_27 = arith.constant dense<0.000000e+00> : vector<64x8xf32>
    %65 = tpu.matmul %64, %53, %cst_27 {dimension_numbers = #tpu.dot_dimension_numbers<[1], [0], [0], [1], [0, 0, 1, 1], [], []>} : vector<64x64xf32>, vector<64x8xf32>, vector<64x8xf32> -> vector<64x8xf32>
    %c16 = arith.constant 16 : index
    %c0_28 = arith.constant 0 : index
    %66 = vector.load %arg5[%c16, %c0_28] : memref<32x32xf32, #tpu.memory_space<vmem>>, vector<8x32xf32>
    %cst_29 = arith.constant dense<0.000000e+00> : vector<64x32xf32>
    %67 = tpu.matmul %65, %66, %cst_29 {dimension_numbers = #tpu.dot_dimension_numbers<[1], [0], [0], [1], [0, 0, 1, 1], [], []>} : vector<64x8xf32>, vector<8x32xf32>, vector<64x32xf32> -> vector<64x32xf32>
    %68 = arith.addf %50, %67 : vector<64x32xf32>
    %69 = vector.extract_strided_slice %13 {offsets = [0, 24], sizes = [64, 8], strides = [1, 1]} : vector<64x32xf32> to vector<64x8xf32>
    %70 = vector.extract_strided_slice %14 {offsets = [0, 24], sizes = [64, 8], strides = [1, 1]} : vector<64x32xf32> to vector<64x8xf32>
    %71 = vector.extract_strided_slice %15 {offsets = [0, 24], sizes = [64, 8], strides = [1, 1]} : vector<64x32xf32> to vector<64x8xf32>
    %cst_30 = arith.constant dense<0.000000e+00> : vector<64x64xf32>
    %72 = tpu.matmul %69, %70, %cst_30 {dimension_numbers = #tpu.dot_dimension_numbers<[1], [1], [0], [0], [0, 0, 1, 0], [], []>} : vector<64x8xf32>, vector<64x8xf32>, vector<64x64xf32> -> vector<64x64xf32>
    %cst_31 = arith.constant dense<0xFF800000> : vector<64xf32>
    %73 = vector.multi_reduction <maximumf>, %72, %cst_31 [1] : vector<64x64xf32> to vector<64xf32>
    %74 = vector.shape_cast %73 : vector<64xf32> to vector<64x1xf32>
    %75 = vector.broadcast %74 : vector<64x1xf32> to vector<64x64xf32>
    %76 = arith.subf %72, %75 : vector<64x64xf32>
    %77 = math.exp %76 : vector<64x64xf32>
    %cst_32 = arith.constant dense<0.000000e+00> : vector<64xf32>
    %78 = vector.multi_reduction <add>, %77, %cst_32 [1] : vector<64x64xf32> to vector<64xf32>
    %79 = vector.shape_cast %78 : vector<64xf32> to vector<64x1xf32>
    %80 = tpu.reciprocal %79 {approx = true} : vector<64x1xf32> -> vector<64x1xf32>
    %81 = vector.broadcast %80 : vector<64x1xf32> to vector<64x64xf32>
    %82 = arith.mulf %77, %81 : vector<64x64xf32>
    %cst_33 = arith.constant dense<0.000000e+00> : vector<64x8xf32>
    %83 = tpu.matmul %82, %71, %cst_33 {dimension_numbers = #tpu.dot_dimension_numbers<[1], [0], [0], [1], [0, 0, 1, 1], [], []>} : vector<64x64xf32>, vector<64x8xf32>, vector<64x8xf32> -> vector<64x8xf32>
    %c24 = arith.constant 24 : index
    %c0_34 = arith.constant 0 : index
    %84 = vector.load %arg5[%c24, %c0_34] : memref<32x32xf32, #tpu.memory_space<vmem>>, vector<8x32xf32>
    %cst_35 = arith.constant dense<0.000000e+00> : vector<64x32xf32>
    %85 = tpu.matmul %83, %84, %cst_35 {dimension_numbers = #tpu.dot_dimension_numbers<[1], [0], [0], [1], [0, 0, 1, 1], [], []>} : vector<64x8xf32>, vector<8x32xf32>, vector<64x32xf32> -> vector<64x32xf32>
    %86 = arith.addf %68, %85 : vector<64x32xf32>
    %87 = vector.broadcast %10 : vector<1x32xf32> to vector<64x32xf32>
    %88 = arith.addf %86, %87 : vector<64x32xf32>
    %c0_36 = arith.constant 0 : index
    %c0_37 = arith.constant 0 : index
    %c0_38 = arith.constant 0 : index
    %89 = vector.load %arg7[%c0_36, %c0_37, %c0_38] : memref<1x64x32xf32, #tpu.memory_space<vmem>>, vector<1x64x32xf32>
    %90 = vector.shape_cast %89 : vector<1x64x32xf32> to vector<64x32xf32>
    %91 = vector.shape_cast %88 : vector<64x32xf32> to vector<1x64x32xf32>
    tpu.vector_store %arg7[%c0_36, %c0_37, %c0_38], %91 {strides = array<i32>} : memref<1x64x32xf32, #tpu.memory_space<vmem>>, vector<1x64x32xf32>,
    return
  }
  func.func @transform_0(%arg0: i32) -> (i32, i32, i32) {
    %c0_i32 = arith.constant 0 : i32
    %c0_i32_0 = arith.constant 0 : i32
    %c0_i32_1 = arith.constant 0 : i32
    return %arg0, %c0_i32, %c0_i32_0 : i32, i32, i32
  }
  func.func @transform_1(%arg0: i32) -> (i32, i32) {
    %c0_i32 = arith.constant 0 : i32
    %c0_i32_0 = arith.constant 0 : i32
    %c0_i32_1 = arith.constant 0 : i32
    return %c0_i32, %c0_i32_0 : i32, i32
  }
  func.func @transform_2(%arg0: i32) -> (i32, i32) {
    %c0_i32 = arith.constant 0 : i32
    %c0_i32_0 = arith.constant 0 : i32
    %c0_i32_1 = arith.constant 0 : i32
    return %c0_i32, %c0_i32_0 : i32, i32
  }
  func.func @transform_3(%arg0: i32) -> (i32, i32) {
    %c0_i32 = arith.constant 0 : i32
    %c0_i32_0 = arith.constant 0 : i32
    %c0_i32_1 = arith.constant 0 : i32
    return %c0_i32, %c0_i32_0 : i32, i32
  }
  func.func @transform_4(%arg0: i32) -> (i32, i32) {
    %c0_i32 = arith.constant 0 : i32
    %c0_i32_0 = arith.constant 0 : i32
    %c0_i32_1 = arith.constant 0 : i32
    return %c0_i32, %c0_i32_0 : i32, i32
  }
  func.func @transform_5(%arg0: i32) -> (i32, i32) {
    %c0_i32 = arith.constant 0 : i32
    %c0_i32_0 = arith.constant 0 : i32
    %c0_i32_1 = arith.constant 0 : i32
    return %c0_i32, %c0_i32_0 : i32, i32
  }
  func.func @transform_6(%arg0: i32) -> (i32, i32, i32) {
    %c0_i32 = arith.constant 0 : i32
    %c0_i32_0 = arith.constant 0 : i32
    %c0_i32_1 = arith.constant 0 : i32
    return %arg0, %c0_i32, %c0_i32_0 : i32, i32, i32
  }
}

</mosaic_0001>

<llo_original>
// kernel: tpu_custom_call.1
$region0: #{tpu_custom_call.1}
  #allocation0 [shape = 'u32[]', space=smem, size = 0x4, offset = 0x4, fixed_abs, tag = 'smem constant byte address 0x4 - core index']
  #allocation1 [shape = 'u32[144,128]{1,0:T(1,128)}', space=vmem, size = 0x12000, scoped, tag = 'internal scratch']
  %s0 = inlined_call_operand.vmem [shape: f32[2,64,32], index: 0, kind: input, shape index: {}]
  %s1 = inlined_call_operand.vmem [shape: f32[64,32], index: 1, kind: input, shape index: {}]
  %s2 = inlined_call_operand.vmem [shape: f32[32,96], index: 2, kind: input, shape index: {}]
  %s3 = inlined_call_operand.vmem [shape: f32[1,96], index: 3, kind: input, shape index: {}]
  %s4 = inlined_call_operand.vmem [shape: f32[32,32], index: 4, kind: input, shape index: {}]
  %s5 = inlined_call_operand.vmem [shape: f32[1,32], index: 5, kind: input, shape index: {}]
  %s6 = inlined_call_operand.vmem [shape: f32[2,64,32], index: 6, kind: output, shape index: {}]
  %s7 = sld [smem:[#allocation0]]
  $region57: #{tpu_custom_call.1} parent=0
    _
  %s9 = ssub.s32 1, %s7
  %s10 = scalar_select 0, %s9, %s7
  loop: start=0, step=1, limit=4
  $region2: #{tpu_custom_call.1} parent=0 // loop_pre_header
    _
  $region3: #{tpu_custom_call.1} parent=0 // loop_header
    %s12 = sphi 0, %s16
    %p13 = scmp.ge.s32.totalorder %s12, 4
    %s22 = sphi 0, %s24
    %s25 = sphi 0, %s22
    %s26 = sphi 0, %s25
    %s42 = sphi 0, %s26
    %s46 = sphi 0, %s46
    %s48 = sphi 0, %s46
    %s49 = sphi 0, %s48
    %s63 = sphi 0, %s49
    %s67 = sphi 0, %s67
    %s69 = sphi 0, %s67
    %s70 = sphi 0, %s69
    %s84 = sphi 0, %s70
    %s88 = sphi 0, %s88
    %s90 = sphi 0, %s88
    %s91 = sphi 0, %s90
    %s105 = sphi 0, %s91
    %s109 = sphi 0, %s109
    %s111 = sphi 0, %s109
    %s112 = sphi 0, %s111
    %s126 = sphi 0, %s112
    %s130 = sphi 0, %s130
    %s132 = sphi 0, %s130
    %s133 = sphi 0, %s132
    %s147 = sphi 0, %s133
    %s153 = sphi 0, %s155
    %s156 = sphi 0, %s153
    %s157 = sphi 0, %s156
    %s173 = sphi 0, %s157
  $region4: #{tpu_custom_call.1} parent=0 // loop_header_branch
    %15 = sbr.rel (%p13) target = $region8
  $region5: #{tpu_custom_call.1} parent=0 // loop_body
    %s17 = ssub.s32 %s12, 1
    %s18 = ssub.s32 %s12, 2
    %s19 = sadd.s32 %s12, 1
    %s20 = ssub.s32 %s12, %s19
    %p21 = scmp.eq.s32.totalorder %s20, 0
    %s23 = sadd.s32 %s22, 1
    %s24 = scalar_select %p21, %s22, %s23
    %p27 = pneg %p21
    %p28 = scmp.eq.s32.totalorder %s12, 1
    %p29 = por %p27, %p28
    %p30 = scmp.ne.s32.totalorder %s22, %s25
    %p31 = scmp.eq.s32.totalorder %s12, 0
    %p32 = por %p30, %p31
    %p33 = scmp.ne.s32.totalorder %s22, %s25
    %p34 = scmp.eq.s32.totalorder %s17, 1
    %p35 = por %p33, %p34
    %p36 = scmp.ne.s32.totalorder %s25, %s26
    %p37 = scmp.eq.s32.totalorder %s17, 0
    %p38 = por %p36, %p37
    %p39 = scmp.ne.s32.totalorder %s25, %s26
    %p40 = scmp.eq.s32.totalorder %s18, 1
    %p41 = por %p39, %p40
    %p43 = scmp.ne.s32.totalorder %s26, %s42
    %p44 = scmp.eq.s32.totalorder %s18, 0
    %p45 = por %p43, %p44
    %s47 = sadd.s32 %s46, 1
    %p50 = scmp.eq.s32.totalorder %s12, 1
    %p51 = scmp.ne.s32.totalorder %s46, %s48
    %p52 = scmp.eq.s32.totalorder %s12, 0
    %p53 = por %p51, %p52
    %p54 = scmp.ne.s32.totalorder %s46, %s48
    %p55 = scmp.eq.s32.totalorder %s17, 1
    %p56 = por %p54, %p55
    %p57 = scmp.ne.s32.totalorder %s48, %s49
    %p58 = scmp.eq.s32.totalorder %s17, 0
    %p59 = por %p57, %p58
    %p60 = scmp.ne.s32.totalorder %s48, %s49
    %p61 = scmp.eq.s32.totalorder %s18, 1
    %p62 = por %p60, %p61
    %p64 = scmp.ne.s32.totalorder %s49, %s63
    %p65 = scmp.eq.s32.totalorder %s18, 0
    %p66 = por %p64, %p65
    %s68 = sadd.s32 %s67, 1
    %p71 = scmp.eq.s32.totalorder %s12, 1
    %p72 = scmp.ne.s32.totalorder %s67, %s69
    %p73 = scmp.eq.s32.totalorder %s12, 0
    %p74 = por %p72, %p73
    %p75 = scmp.ne.s32.totalorder %s67, %s69
    %p76 = scmp.eq.s32.totalorder %s17, 1
    %p77 = por %p75, %p76
    %p78 = scmp.ne.s32.totalorder %s69, %s70
    %p79 = scmp.eq.s32.totalorder %s17, 0
    %p80 = por %p78, %p79
    %p81 = scmp.ne.s32.totalorder %s69, %s70
    %p82 = scmp.eq.s32.totalorder %s18, 1
    %p83 = por %p81, %p82
    %p85 = scmp.ne.s32.totalorder %s70, %s84
    %p86 = scmp.eq.s32.totalorder %s18, 0
    %p87 = por %p85, %p86
    %s89 = sadd.s32 %s88, 1
    %p92 = scmp.eq.s32.totalorder %s12, 1
    %p93 = scmp.ne.s32.totalorder %s88, %s90
    %p94 = scmp.eq.s32.totalorder %s12, 0
    %p95 = por %p93, %p94
    %p96 = scmp.ne.s32.totalorder %s88, %s90
    %p97 = scmp.eq.s32.totalorder %s17, 1
    %p98 = por %p96, %p97
    %p99 = scmp.ne.s32.totalorder %s90, %s91
    %p100 = scmp.eq.s32.totalorder %s17, 0
    %p101 = por %p99, %p100
    %p102 = scmp.ne.s32.totalorder %s90, %s91
    %p103 = scmp.eq.s32.totalorder %s18, 1
    %p104 = por %p102, %p103
    %p106 = scmp.ne.s32.totalorder %s91, %s105
    %p107 = scmp.eq.s32.totalorder %s18, 0
    %p108 = por %p106, %p107
    %s110 = sadd.s32 %s109, 1
    %p113 = scmp.eq.s32.totalorder %s12, 1
    %p114 = scmp.ne.s32.totalorder %s109, %s111
    %p115 = scmp.eq.s32.totalorder %s12, 0
    %p116 = por %p114, %p115
    %p117 = scmp.ne.s32.totalorder %s109, %s111
    %p118 = scmp.eq.s32.totalorder %s17, 1
    %p119 = por %p117, %p118
    %p120 = scmp.ne.s32.totalorder %s111, %s112
    %p121 = scmp.eq.s32.totalorder %s17, 0
    %p122 = por %p120, %p121
    %p123 = scmp.ne.s32.totalorder %s111, %s112
    %p124 = scmp.eq.s32.totalorder %s18, 1
    %p125 = por %p123, %p124
    %p127 = scmp.ne.s32.totalorder %s112, %s126
    %p128 = scmp.eq.s32.totalorder %s18, 0
    %p129 = por %p127, %p128
    %s131 = sadd.s32 %s130, 1
    %p134 = scmp.eq.s32.totalorder %s12, 1
    %p135 = scmp.ne.s32.totalorder %s130, %s132
    %p136 = scmp.eq.s32.totalorder %s12, 0
    %p137 = por %p135, %p136
    %p138 = scmp.ne.s32.totalorder %s130, %s132
    %p139 = scmp.eq.s32.totalorder %s17, 1
    %p140 = por %p138, %p139
    %p141 = scmp.ne.s32.totalorder %s132, %s133
    %p142 = scmp.eq.s32.totalorder %s17, 0
    %p143 = por %p141, %p142
    %p144 = scmp.ne.s32.totalorder %s132, %s133
    %p145 = scmp.eq.s32.totalorder %s18, 1
    %p146 = por %p144, %p145
    %p148 = scmp.ne.s32.totalorder %s133, %s147
    %p149 = scmp.eq.s32.totalorder %s18, 0
    %p150 = por %p148, %p149
    %s151 = ssub.s32 %s12, %s19
    %p152 = scmp.eq.s32.totalorder %s151, 0
    %s154 = sadd.s32 %s153, 1
    %s155 = scalar_select %p152, %s153, %s154
    %p158 = pneg %p152
    %p159 = scmp.eq.s32.totalorder %s12, 1
    %p160 = por %p158, %p159
    %p161 = scmp.ne.s32.totalorder %s153, %s156
    %p162 = scmp.eq.s32.totalorder %s12, 0
    %p163 = por %p161, %p162
    %p164 = scmp.ne.s32.totalorder %s153, %s156
    %p165 = scmp.eq.s32.totalorder %s17, 1
    %p166 = por %p164, %p165
    %p167 = scmp.ne.s32.totalorder %s156, %s157
    %p168 = scmp.eq.s32.totalorder %s17, 0
    %p169 = por %p167, %p168
    %p170 = scmp.ne.s32.totalorder %s156, %s157
    %p171 = scmp.eq.s32.totalorder %s18, 1
    %p172 = por %p170, %p171
    %p174 = scmp.ne.s32.totalorder %s157, %s173
    %p175 = scmp.eq.s32.totalorder %s18, 0
    %p176 = por %p174, %p175
    %p177 = scmp.le.s32.totalorder 1, %s12
    %p178 = scmp.lt.s32.totalorder %s12, 3
    %p179 = pnand %p177, %p178
    %p180 = pneg %p179
    // Predicated region
    $region9: #{tpu_custom_call.1} parent=5 // pred_check
      _
    $region10: #{tpu_custom_call.1} parent=5 // pred_check_branch
      %182 = sbr.rel (%p179) target = $region12
    $region11: #{tpu_custom_call.1} parent=5 // pred_region
      %s183 = ssub.s32 %s12, 1
      // Predicated region
      $region13: #{tpu_custom_call.1} parent=11 // pred_check
        %p184 = pneg %p59
      $region14: #{tpu_custom_call.1} parent=11 // pred_check_branch
        %186 = sbr.rel (%p184) target = $region16
      $region15: #{tpu_custom_call.1} parent=11 // pred_region
        _
      $region16: #{tpu_custom_call.1} parent=11 // pred_fallthru
        _
      // Predicated region
      $region17: #{tpu_custom_call.1} parent=11 // pred_check
        %p187 = pneg %p80
      $region18: #{tpu_custom_call.1} parent=11 // pred_check_branch
        %189 = sbr.rel (%p187) target = $region20
      $region19: #{tpu_custom_call.1} parent=11 // pred_region
        _
      $region20: #{tpu_custom_call.1} parent=11 // pred_fallthru
        _
      // Predicated region
      $region21: #{tpu_custom_call.1} parent=11 // pred_check
        %p190 = pneg %p101
      $region22: #{tpu_custom_call.1} parent=11 // pred_check_branch
        %192 = sbr.rel (%p190) target = $region24
      $region23: #{tpu_custom_call.1} parent=11 // pred_region
        _
      $region24: #{tpu_custom_call.1} parent=11 // pred_fallthru
        _
      // Predicated region
      $region25: #{tpu_custom_call.1} parent=11 // pred_check
        %p193 = pneg %p122
      $region26: #{tpu_custom_call.1} parent=11 // pred_check_branch
        %195 = sbr.rel (%p193) target = $region28
      $region27: #{tpu_custom_call.1} parent=11 // pred_region
        _
      $region28: #{tpu_custom_call.1} parent=11 // pred_fallthru
        _
      // Predicated region
      $region29: #{tpu_custom_call.1} parent=11 // pred_check
        %p196 = pneg %p143
      $region30: #{tpu_custom_call.1} parent=11 // pred_check_branch
        %198 = sbr.rel (%p196) target = $region32
      $region31: #{tpu_custom_call.1} parent=11 // pred_region
        _
      $region32: #{tpu_custom_call.1} parent=11 // pred_fallthru
        _
    $region12: #{tpu_custom_call.1} parent=5 // pred_fallthru
      _
    %p199 = scmp.lt.s32.totalorder %s12, 2
    // Predicated region
    $region33: #{tpu_custom_call.1} parent=5 // pred_check
      %p200 = pneg %p199
    $region34: #{tpu_custom_call.1} parent=5 // pred_check_branch
      %202 = sbr.rel (%p200) target = $region36
    $region35: #{tpu_custom_call.1} parent=5 // pred_region
      // Predicated region
      $region37: #{tpu_custom_call.1} parent=35 // pred_check
        %p203 = pneg %p32
      $region38: #{tpu_custom_call.1} parent=35 // pred_check_branch
        %205 = sbr.rel (%p203) target = $region40
      $region39: #{tpu_custom_call.1} parent=35 // pred_region
        %p206 = scmp.lt.s32.totalorder %s12, 1
        %s207 = scalar_select %p206, %s12, 1
        %s208 = smul.addr %s207, 8
        %s209 = smul.addr %s208, 8
        %s210 = scalar_lea.vmem %s0, %s209
      $region40: #{tpu_custom_call.1} parent=35 // pred_fallthru
        _
    $region36: #{tpu_custom_call.1} parent=5 // pred_fallthru
      _
    %p211 = scmp.le.s32.totalorder 1, %s12
    %p212 = scmp.lt.s32.totalorder %s12, 3
    %p213 = pnand %p211, %p212
    %p214 = pneg %p213
    // Predicated region
    $region41: #{tpu_custom_call.1} parent=5 // pred_check
      _
    $region42: #{tpu_custom_call.1} parent=5 // pred_check_branch
      %216 = sbr.rel (%p213) target = $region44
    $region43: #{tpu_custom_call.1} parent=5 // pred_region
      %s217 = ssub.s32 %s12, 1
      %p218 = scmp.lt.s32.totalorder %s17, 1
      %s219 = scalar_select %p218, %s17, 1
      %s220 = smul.addr %s219, 8
      %s221 = smul.addr %s220, 8
      %s222 = scalar_lea.vmem %s0, %s221
      %p223 = pneg %p38
      %p224 = pneg %p35
      %p225 = pneg %p59
      %p226 = pneg %p56
      %p227 = pneg %p80
      %p228 = pneg %p77
      %p229 = pneg %p101
      %p230 = pneg %p98
      %p231 = pneg %p122
      %p232 = pneg %p119
      %p233 = pneg %p143
      %p234 = pneg %p140
      %p235 = pneg %p169
      %p236 = pneg %p166
      %p237 = scmp.lt.s32.totalorder %s17, 1
      %s238 = scalar_select %p237, %s17, 1
      %s239 = smul.addr %s238, 8
      %s240 = smul.addr %s239, 8
      %s241 = scalar_lea.vmem %s6, %s240
      %p242 = scmp.lt.s32.totalorder %s17, 1
      %s243 = scalar_select %p242, %s17, 1
      %s244 = smul.addr %s243, 8
      %s245 = smul.addr %s244, 8
      %s246 = scalar_lea.vmem %s0, %s245
      %p247 = scmp.lt.s32.totalorder %s17, 1
      %s248 = scalar_select %p247, %s17, 1
      %s249 = smul.addr %s248, 8
      %s250 = smul.addr %s249, 8
      %s251 = scalar_lea.vmem %s6, %s250
      %v252 = vld [vmem:[%s246] sm:$0xff]
      %v253 = vld [vmem:[%s246 + $0x8] sm:$0xff]
      %v254 = vld [vmem:[%s246 + $0x10] sm:$0xff]
      %v255 = vld [vmem:[%s246 + $0x18] sm:$0xff]
      %v256 = vld [vmem:[%s246 + $0x20] sm:$0xff]
      %v257 = vld [vmem:[%s246 + $0x28] sm:$0xff]
      %v258 = vld [vmem:[%s246 + $0x30] sm:$0xff]
      %v259 = vld [vmem:[%s246 + $0x38] sm:$0xff]
      %v260 = vld [vmem:[%s1] sm:$0xff]
      %v261 = vld [vmem:[%s1 + $0x8] sm:$0xff]
      %v262 = vld [vmem:[%s1 + $0x10] sm:$0xff]
      %v263 = vld [vmem:[%s1 + $0x18] sm:$0xff]
      %v264 = vld [vmem:[%s1 + $0x20] sm:$0xff]
      %v265 = vld [vmem:[%s1 + $0x28] sm:$0xff]
      %v266 = vld [vmem:[%s1 + $0x30] sm:$0xff]
      %v267 = vld [vmem:[%s1 + $0x38] sm:$0xff]
      %v268 = vadd.f32 %v252, %v260
      %v269 = vadd.f32 %v253, %v261
      %v270 = vadd.f32 %v254, %v262
      %v271 = vadd.f32 %v255, %v263
      %v272 = vadd.f32 %v256, %v264
      %v273 = vadd.f32 %v257, %v265
      %v274 = vadd.f32 %v258, %v266
      %v275 = vadd.f32 %v259, %v267
      %v276 = vld [vmem:[%s2] sm:$0xff]
      %v277 = vld [vmem:[%s2 + $0x8] sm:$0xff]
      %v278 = vld [vmem:[%s2 + $0x10] sm:$0xff]
      %v279 = vld [vmem:[%s2 + $0x18] sm:$0xff]
      %v280 = vld [vmem:[%s3] sm:$0x1]
      %v282 = vlaneseq
      %v283 = vshrl.u32 %v282, 7
      %v284 = vsub.s32 0, %v283
      %v285 = vrot.slane %v280, %v284
      %vm287 = vcmask 261120
      %v289 = vsel %vm287, %v268, 0
      %v292 = vsel %vm287, %v269, 0
      %v295 = vsel %vm287, %v270, 0
      %v298 = vsel %vm287, %v271, 0
      %v301 = vsel %vm287, %v272, 0
      %v304 = vsel %vm287, %v273, 0
      %v307 = vsel %vm287, %v274, 0
      %v310 = vsel %vm287, %v275, 0
      %312 = vmatprep.subr.mxu0 0.0
      %313 = vmatpush1.msra.mxu0 0.0
      %314 = vmatprep.subr.mxu0 0.0
      %315 = vmatpush1.msra.mxu0 0.0
      %316 = vmatprep.subr.mxu0 0.0
      %317 = vmatpush1.msra.mxu0 0.0
      %318 = vmatprep.subr.mxu0 0.0
      %319 = vmatpush1.msra.mxu0 0.0
      %320 = vmatprep.subr.mxu0 0.0
      %321 = vmatpush1.msra.mxu0 0.0
      %322 = vmatprep.subr.mxu0 0.0
      %323 = vmatpush1.msra.mxu0 0.0
      %324 = vmatprep.subr.mxu0 0.0
      %325 = vmatpush1.msra.mxu0 0.0
      %326 = vmatprep.subr.mxu0 0.0
      %327 = vmatpush1.msra.mxu0 0.0
      %328 = vmatprep.subr.mxu0 0.0
      %329 = vmatpush1.msra.mxu0 0.0
      %330 = vmatprep.subr.mxu0 0.0
      %331 = vmatpush1.msra.mxu0 0.0
      %332 = vmatprep.subr.mxu0 0.0
      %333 = vmatpush1.msra.mxu0 0.0
      %334 = vmatprep.subr.mxu0 0.0
      %335 = vmatpush1.msra.mxu0 0.0
      %336 = vmatprep.subr.mxu0 0.0
      %337 = vmatpush1.msra.mxu0 %v279
      %338 = vmatprep.subr.mxu0 0.0
      %339 = vmatpush1.msra.mxu0 %v278
      %340 = vmatprep.subr.mxu0 0.0
      %341 = vmatpush1.msra.mxu0 %v277
      %342 = vmatprep.subr.mxu0 0.0
      %343 = vmatpush1.msra.mxu0 %v276
      %344 = vmatprep.subr.mxu0 0.0
      %345 = vmatpush2.msra.mxu0 0.0
      %346 = vmatprep.subr.mxu0 0.0
      %347 = vmatpush2.msra.mxu0 0.0
      %348 = vmatprep.subr.mxu0 0.0
      %349 = vmatpush2.msra.mxu0 0.0
      %350 = vmatprep.subr.mxu0 0.0
      %351 = vmatpush2.msra.mxu0 0.0
      %352 = vmatprep.subr.mxu0 0.0
      %353 = vmatpush2.msra.mxu0 0.0
      %354 = vmatprep.subr.mxu0 0.0
      %355 = vmatpush2.msra.mxu0 0.0
      %356 = vmatprep.subr.mxu0 0.0
      %357 = vmatpush2.msra.mxu0 0.0
      %358 = vmatprep.subr.mxu0 0.0
      %359 = vmatpush2.msra.mxu0 0.0
      %360 = vmatprep.subr.mxu0 0.0
      %361 = vmatpush2.msra.mxu0 0.0
      %362 = vmatprep.subr.mxu0 0.0
      %363 = vmatpush2.msra.mxu0 0.0
      %364 = vmatprep.subr.mxu0 0.0
      %365 = vmatpush2.msra.mxu0 0.0
      %366 = vmatprep.subr.mxu0 0.0
      %367 = vmatpush2.msra.mxu0 0.0
      %368 = vmatprep.subr.mxu0 0.0
      %369 = vmatpush2.msra.mxu0 0.0
      %370 = vmatprep.subr.mxu0 0.0
      %371 = vmatpush2.msra.mxu0 0.0
      %372 = vmatprep.subr.mxu0 0.0
      %373 = vmatpush2.msra.mxu0 0.0
      %374 = vmatprep.subr.mxu0 0.0
      %375 = vmatpush2.msra.mxu0 0.0
      %376 = vmatprep.mubr.f32.mxu0 0.0
      %377 = vmatmul.mubr.f32.gmra.mxu0 %v289
      %v378 = vpop.f32.mrf.mxu0
      %v379 = vadd.f32 %v285, %v378
      %v380 = vpop.f32.mrf.mxu0
      %381 = vmatprep.mubr.f32.mxu0 0.0
      %382 = vmatmul.mubr.f32.gmra.mxu0 %v292
      %v383 = vpop.f32.mrf.mxu0
      %v384 = vadd.f32 %v285, %v383
      %v385 = vpop.f32.mrf.mxu0
      %386 = vmatprep.mubr.f32.mxu0 0.0
      %387 = vmatmul.mubr.f32.gmra.mxu0 %v295
      %v388 = vpop.f32.mrf.mxu0
      %v389 = vadd.f32 %v285, %v388
      %v390 = vpop.f32.mrf.mxu0
      %391 = vmatprep.mubr.f32.mxu0 0.0
      %392 = vmatmul.mubr.f32.gmra.mxu0 %v298
      %v393 = vpop.f32.mrf.mxu0
      %v394 = vadd.f32 %v285, %v393
      %v395 = vpop.f32.mrf.mxu0
      %396 = vmatprep.mubr.f32.mxu0 0.0
      %397 = vmatmul.mubr.f32.gmra.mxu0 %v301
      %v398 = vpop.f32.mrf.mxu0
      %v399 = vadd.f32 %v285, %v398
      %v400 = vpop.f32.mrf.mxu0
      %401 = vmatprep.mubr.f32.mxu0 0.0
      %402 = vmatmul.mubr.f32.gmra.mxu0 %v304
      %v403 = vpop.f32.mrf.mxu0
      %v404 = vadd.f32 %v285, %v403
      %v405 = vpop.f32.mrf.mxu0
      %406 = vmatprep.mubr.f32.mxu0 0.0
      %407 = vmatmul.mubr.f32.gmra.mxu0 %v307
      %v408 = vpop.f32.mrf.mxu0
      %v409 = vadd.f32 %v285, %v408
      %v410 = vpop.f32.mrf.mxu0
      %411 = vmatprep.mubr.f32.mxu0 0.0
      %412 = vmatmul.mubr.f32.gmra.mxu0 %v310
      %v413 = vpop.f32.mrf.mxu0
      %v414 = vadd.f32 %v285, %v413
      %v415 = vpop.f32.mrf.mxu0
      %416 = vdwg.mxu0
      %v417 = vld [vmem:[%s5] sm:$0x1]
      %v418 = vmul.f32 %v379, 0.35355338
      %v419 = vmul.f32 %v384, 0.35355338
      %v420 = vmul.f32 %v389, 0.35355338
      %v421 = vmul.f32 %v394, 0.35355338
      %v422 = vmul.f32 %v399, 0.35355338
      %v423 = vmul.f32 %v404, 0.35355338
      %v424 = vmul.f32 %v409, 0.35355338
      %v425 = vmul.f32 %v414, 0.35355338
      %434 = vrot.lane.b32.xlu0 %v379, 96
      %v435 = vpop.permute.xlu0 %434
      %436 = vrot.lane.b32.xlu0 %v384, 96
      %v437 = vpop.permute.xlu0 %436
      %438 = vrot.lane.b32.xlu0 %v389, 96
      %v439 = vpop.permute.xlu0 %438
      %440 = vrot.lane.b32.xlu0 %v394, 96
      %v441 = vpop.permute.xlu0 %440
      %442 = vrot.lane.b32.xlu0 %v399, 96
      %v443 = vpop.permute.xlu0 %442
      %444 = vrot.lane.b32.xlu0 %v404, 96
      %v445 = vpop.permute.xlu0 %444
      %446 = vrot.lane.b32.xlu0 %v409, 96
      %v447 = vpop.permute.xlu0 %446
      %448 = vrot.lane.b32.xlu0 %v414, 96
      %v449 = vpop.permute.xlu0 %448
      %vm450 = vcmask 64512
      %v452 = vsel %vm450, %v418, 0
      %v455 = vsel %vm450, %v419, 0
      %v458 = vsel %vm450, %v420, 0
      %v461 = vsel %vm450, %v421, 0
      %v464 = vsel %vm450, %v422, 0
      %v467 = vsel %vm450, %v423, 0
      %v470 = vsel %vm450, %v424, 0
      %v473 = vsel %vm450, %v425, 0
      %v475 = vsel %vm450, %v435, 0
      %v477 = vsel %vm450, %v437, 0
      %v479 = vsel %vm450, %v439, 0
      %v481 = vsel %vm450, %v441, 0
      %v483 = vsel %vm450, %v443, 0
      %v485 = vsel %vm450, %v445, 0
      %v487 = vsel %vm450, %v447, 0
      %v489 = vsel %vm450, %v449, 0
      %491 = vmatprep.subr.mxu0 0.0
      %492 = vmatpush1.xpose.msra.mxu0 0.0
      %493 = vmatprep.subr.mxu0 0.0
      %494 = vmatpush1.xpose.msra.mxu0 0.0
      %495 = vmatprep.subr.mxu0 0.0
      %496 = vmatpush1.xpose.msra.mxu0 0.0
      %497 = vmatprep.subr.mxu0 0.0
      %498 = vmatpush1.xpose.msra.mxu0 0.0
      %499 = vmatprep.subr.mxu0 0.0
      %500 = vmatpush1.xpose.msra.mxu0 0.0
      %501 = vmatprep.subr.mxu0 0.0
      %502 = vmatpush1.xpose.msra.mxu0 0.0
      %503 = vmatprep.subr.mxu0 0.0
      %504 = vmatpush1.xpose.msra.mxu0 0.0
      %505 = vmatprep.subr.mxu0 0.0
      %506 = vmatpush1.xpose.msra.mxu0 0.0
      %507 = vmatprep.subr.mxu0 0.0
      %508 = vmatpush1.xpose.msra.mxu0 %v489
      %509 = vmatprep.subr.mxu0 0.0
      %510 = vmatpush1.xpose.msra.mxu0 %v487
      %511 = vmatprep.subr.mxu0 0.0
      %512 = vmatpush1.xpose.msra.mxu0 %v485
      %513 = vmatprep.subr.mxu0 0.0
      %514 = vmatpush1.xpose.msra.mxu0 %v483
      %515 = vmatprep.subr.mxu0 0.0
      %516 = vmatpush1.xpose.msra.mxu0 %v481
      %517 = vmatprep.subr.mxu0 0.0
      %518 = vmatpush1.xpose.msra.mxu0 %v479
      %519 = vmatprep.subr.mxu0 0.0
      %520 = vmatpush1.xpose.msra.mxu0 %v477
      %521 = vmatprep.subr.mxu0 0.0
      %522 = vmatpush1.xpose.msra.mxu0 %v475
      %523 = vmatprep.subr.mxu0 0.0
      %524 = vmatpush2.xpose.msra.mxu0 0.0
      %525 = vmatprep.subr.mxu0 0.0
      %526 = vmatpush2.xpose.msra.mxu0 0.0
      %527 = vmatprep.subr.mxu0 0.0
      %528 = vmatpush2.xpose.msra.mxu0 0.0
      %529 = vmatprep.subr.mxu0 0.0
      %530 = vmatpush2.xpose.msra.mxu0 0.0
      %531 = vmatprep.subr.mxu0 0.0
      %532 = vmatpush2.xpose.msra.mxu0 0.0
      %533 = vmatprep.subr.mxu0 0.0
      %534 = vmatpush2.xpose.msra.mxu0 0.0
      %535 = vmatprep.subr.mxu0 0.0
      %536 = vmatpush2.xpose.msra.mxu0 0.0
      %537 = vmatprep.subr.mxu0 0.0
      %538 = vmatpush2.xpose.msra.mxu0 0.0
      %539 = vmatprep.subr.mxu0 0.0
      %540 = vmatpush2.xpose.msra.mxu0 0.0
      %541 = vmatprep.subr.mxu0 0.0
      %542 = vmatpush2.xpose.msra.mxu0 0.0
      %543 = vmatprep.subr.mxu0 0.0
      %544 = vmatpush2.xpose.msra.mxu0 0.0
      %545 = vmatprep.subr.mxu0 0.0
      %546 = vmatpush2.xpose.msra.mxu0 0.0
      %547 = vmatprep.subr.mxu0 0.0
      %548 = vmatpush2.xpose.msra.mxu0 0.0
      %549 = vmatprep.subr.mxu0 0.0
      %550 = vmatpush2.xpose.msra.mxu0 0.0
      %551 = vmatprep.subr.mxu0 0.0
      %552 = vmatpush2.xpose.msra.mxu0 0.0
      %553 = vmatprep.subr.mxu0 0.0
      %554 = vmatpush2.xpose.msra.mxu0 0.0
      %555 = vmatprep.mubr.f32.mxu0 0.0
      %556 = vmatmul.mubr.f32.gmra.mxu0 %v452
      %v557 = vpop.f32.mrf.mxu0
      %v558 = vadd.f32 0.0, %v557
      %v559 = vpop.f32.mrf.mxu0
      %560 = vmatprep.mubr.f32.mxu0 0.0
      %561 = vmatmul.mubr.f32.gmra.mxu0 %v455
      %v562 = vpop.f32.mrf.mxu0
      %v563 = vadd.f32 0.0, %v562
      %v564 = vpop.f32.mrf.mxu0
      %565 = vmatprep.mubr.f32.mxu0 0.0
      %566 = vmatmul.mubr.f32.gmra.mxu0 %v458
      %v567 = vpop.f32.mrf.mxu0
      %v568 = vadd.f32 0.0, %v567
      %v569 = vpop.f32.mrf.mxu0
      %570 = vmatprep.mubr.f32.mxu0 0.0
      %571 = vmatmul.mubr.f32.gmra.mxu0 %v461
      %v572 = vpop.f32.mrf.mxu0
      %v573 = vadd.f32 0.0, %v572
      %v574 = vpop.f32.mrf.mxu0
      %575 = vmatprep.mubr.f32.mxu0 0.0
      %576 = vmatmul.mubr.f32.gmra.mxu0 %v464
      %v577 = vpop.f32.mrf.mxu0
      %v578 = vadd.f32 0.0, %v577
      %v579 = vpop.f32.mrf.mxu0
      %580 = vmatprep.mubr.f32.mxu0 0.0
      %581 = vmatmul.mubr.f32.gmra.mxu0 %v467
      %v582 = vpop.f32.mrf.mxu0
      %v583 = vadd.f32 0.0, %v582
      %v584 = vpop.f32.mrf.mxu0
      %585 = vmatprep.mubr.f32.mxu0 0.0
      %586 = vmatmul.mubr.f32.gmra.mxu0 %v470
      %v587 = vpop.f32.mrf.mxu0
      %v588 = vadd.f32 0.0, %v587
      %v589 = vpop.f32.mrf.mxu0
      %590 = vmatprep.mubr.f32.mxu0 0.0
      %591 = vmatmul.mubr.f32.gmra.mxu0 %v473
      %v592 = vpop.f32.mrf.mxu0
      %v593 = vadd.f32 0.0, %v592
      %v594 = vpop.f32.mrf.mxu0
      %595 = vdwg.mxu0
      %vm596 = vcmask 523264
      %v597 = vsel %vm596, %v558, -inf
      %598 = vmax.xlane.f32.xlu0 %v597
      %v599 = vpop.xlane.xlu0 %598
      %v600 = vsel %vm596, %v563, -inf
      %601 = vmax.xlane.f32.xlu0 %v600
      %v602 = vpop.xlane.xlu0 %601
      %v603 = vsel %vm596, %v568, -inf
      %604 = vmax.xlane.f32.xlu0 %v603
      %v605 = vpop.xlane.xlu0 %604
      %v606 = vsel %vm596, %v573, -inf
      %607 = vmax.xlane.f32.xlu0 %v606
      %v608 = vpop.xlane.xlu0 %607
      %v609 = vsel %vm596, %v578, -inf
      %610 = vmax.xlane.f32.xlu0 %v609
      %v611 = vpop.xlane.xlu0 %610
      %v612 = vsel %vm596, %v583, -inf
      %613 = vmax.xlane.f32.xlu0 %v612
      %v614 = vpop.xlane.xlu0 %613
      %v615 = vsel %vm596, %v588, -inf
      %616 = vmax.xlane.f32.xlu0 %v615
      %v617 = vpop.xlane.xlu0 %616
      %v618 = vsel %vm596, %v593, -inf
      %619 = vmax.xlane.f32.xlu0 %v618
      %v620 = vpop.xlane.xlu0 %619
      %v621 = vsub.f32 %v558, %v599
      %v622 = vsub.f32 %v563, %v602
      %v623 = vsub.f32 %v568, %v605
      %v624 = vsub.f32 %v573, %v608
      %v625 = vsub.f32 %v578, %v611
      %v626 = vsub.f32 %v583, %v614
      %v627 = vsub.f32 %v588, %v617
      %v628 = vsub.f32 %v593, %v620
      %v629 = vmul.f32 %v621, 1.442695
      %v630 = vpow.pop %v629
      %v631 = vmul.f32 %v622, 1.442695
      %v632 = vpow.pop %v631
      %v633 = vmul.f32 %v623, 1.442695
      %v634 = vpow.pop %v633
      %v635 = vmul.f32 %v624, 1.442695
      %v636 = vpow.pop %v635
      %v637 = vmul.f32 %v625, 1.442695
      %v638 = vpow.pop %v637
      %v639 = vmul.f32 %v626, 1.442695
      %v640 = vpow.pop %v639
      %v641 = vmul.f32 %v627, 1.442695
      %v642 = vpow.pop %v641
      %v643 = vmul.f32 %v628, 1.442695
      %v644 = vpow.pop %v643
      %v645 = vsel %vm596, %v630, 0.0
      %646 = vadd.xlane.f32.xlu0 %v645
      %v647 = vpop.xlane.xlu0 %646
      %v648 = vsel %vm596, %v632, 0.0
      %649 = vadd.xlane.f32.xlu0 %v648
      %v650 = vpop.xlane.xlu0 %649
      %v651 = vsel %vm596, %v634, 0.0
      %652 = vadd.xlane.f32.xlu0 %v651
      %v653 = vpop.xlane.xlu0 %652
      %v654 = vsel %vm596, %v636, 0.0
      %655 = vadd.xlane.f32.xlu0 %v654
      %v656 = vpop.xlane.xlu0 %655
      %v657 = vsel %vm596, %v638, 0.0
      %658 = vadd.xlane.f32.xlu0 %v657
      %v659 = vpop.xlane.xlu0 %658
      %v660 = vsel %vm596, %v640, 0.0
      %661 = vadd.xlane.f32.xlu0 %v660
      %v662 = vpop.xlane.xlu0 %661
      %v663 = vsel %vm596, %v642, 0.0
      %664 = vadd.xlane.f32.xlu0 %v663
      %v665 = vpop.xlane.xlu0 %664
      %v666 = vsel %vm596, %v644, 0.0
      %667 = vadd.xlane.f32.xlu0 %v666
      %v668 = vpop.xlane.xlu0 %667
      %v669 = vrcp.pop %v647
      %v670 = vrcp.pop %v650
      %v671 = vrcp.pop %v653
      %v672 = vrcp.pop %v656
      %v673 = vrcp.pop %v659
      %v674 = vrcp.pop %v662
      %v675 = vrcp.pop %v665
      %v676 = vrcp.pop %v668
      %v677 = vmul.f32 %v630, %v669
      %v678 = vmul.f32 %v632, %v670
      %v679 = vmul.f32 %v634, %v671
      %v680 = vmul.f32 %v636, %v672
      %v681 = vmul.f32 %v638, %v673
      %v682 = vmul.f32 %v640, %v674
      %v683 = vmul.f32 %v642, %v675
      %v684 = vmul.f32 %v644, %v676
      %685 = vrot.lane.b32.xlu0 %v379, 64
      %v686 = vpop.permute.xlu0 %685
      %687 = vrot.lane.b32.xlu0 %v384, 64
      %v688 = vpop.permute.xlu0 %687
      %689 = vrot.lane.b32.xlu0 %v389, 64
      %v690 = vpop.permute.xlu0 %689
      %691 = vrot.lane.b32.xlu0 %v394, 64
      %v692 = vpop.permute.xlu0 %691
      %693 = vrot.lane.b32.xlu0 %v399, 64
      %v694 = vpop.permute.xlu0 %693
      %695 = vrot.lane.b32.xlu0 %v404, 64
      %v696 = vpop.permute.xlu0 %695
      %697 = vrot.lane.b32.xlu0 %v409, 64
      %v698 = vpop.permute.xlu0 %697
      %699 = vrot.lane.b32.xlu0 %v414, 64
      %v700 = vpop.permute.xlu0 %699
      %v710 = vsel %vm596, %v677, 0
      %v713 = vsel %vm596, %v678, 0
      %v716 = vsel %vm596, %v679, 0
      %v719 = vsel %vm596, %v680, 0
      %v722 = vsel %vm596, %v681, 0
      %v725 = vsel %vm596, %v682, 0
      %v728 = vsel %vm596, %v683, 0
      %v731 = vsel %vm596, %v684, 0
      %733 = vmatprep.subr.mxu0 0.0
      %734 = vmatpush1.msra.mxu0 0.0
      %735 = vmatprep.subr.mxu0 0.0
      %736 = vmatpush1.msra.mxu0 0.0
      %737 = vmatprep.subr.mxu0 0.0
      %738 = vmatpush1.msra.mxu0 0.0
      %739 = vmatprep.subr.mxu0 0.0
      %740 = vmatpush1.msra.mxu0 0.0
      %741 = vmatprep.subr.mxu0 0.0
      %742 = vmatpush1.msra.mxu0 0.0
      %743 = vmatprep.subr.mxu0 0.0
      %744 = vmatpush1.msra.mxu0 0.0
      %745 = vmatprep.subr.mxu0 0.0
      %746 = vmatpush1.msra.mxu0 0.0
      %747 = vmatprep.subr.mxu0 0.0
      %748 = vmatpush1.msra.mxu0 0.0
      %749 = vmatprep.subr.mxu0 0.0
      %750 = vmatpush1.msra.mxu0 %v700
      %751 = vmatprep.subr.mxu0 0.0
      %752 = vmatpush1.msra.mxu0 %v698
      %753 = vmatprep.subr.mxu0 0.0
      %754 = vmatpush1.msra.mxu0 %v696
      %755 = vmatprep.subr.mxu0 0.0
      %756 = vmatpush1.msra.mxu0 %v694
      %757 = vmatprep.subr.mxu0 0.0
      %758 = vmatpush1.msra.mxu0 %v692
      %759 = vmatprep.subr.mxu0 0.0
      %760 = vmatpush1.msra.mxu0 %v690
      %761 = vmatprep.subr.mxu0 0.0
      %762 = vmatpush1.msra.mxu0 %v688
      %763 = vmatprep.subr.mxu0 0.0
      %764 = vmatpush1.msra.mxu0 %v686
      %765 = vmatprep.subr.mxu0 0.0
      %766 = vmatpush2.msra.mxu0 0.0
      %767 = vmatprep.subr.mxu0 0.0
      %768 = vmatpush2.msra.mxu0 0.0
      %769 = vmatprep.subr.mxu0 0.0
      %770 = vmatpush2.msra.mxu0 0.0
      %771 = vmatprep.subr.mxu0 0.0
      %772 = vmatpush2.msra.mxu0 0.0
      %773 = vmatprep.subr.mxu0 0.0
      %774 = vmatpush2.msra.mxu0 0.0
      %775 = vmatprep.subr.mxu0 0.0
      %776 = vmatpush2.msra.mxu0 0.0
      %777 = vmatprep.subr.mxu0 0.0
      %778 = vmatpush2.msra.mxu0 0.0
      %779 = vmatprep.subr.mxu0 0.0
      %780 = vmatpush2.msra.mxu0 0.0
      %781 = vmatprep.subr.mxu0 0.0
      %782 = vmatpush2.msra.mxu0 0.0
      %783 = vmatprep.subr.mxu0 0.0
      %784 = vmatpush2.msra.mxu0 0.0
      %785 = vmatprep.subr.mxu0 0.0
      %786 = vmatpush2.msra.mxu0 0.0
      %787 = vmatprep.subr.mxu0 0.0
      %788 = vmatpush2.msra.mxu0 0.0
      %789 = vmatprep.subr.mxu0 0.0
      %790 = vmatpush2.msra.mxu0 0.0
      %791 = vmatprep.subr.mxu0 0.0
      %792 = vmatpush2.msra.mxu0 0.0
      %793 = vmatprep.subr.mxu0 0.0
      %794 = vmatpush2.msra.mxu0 0.0
      %795 = vmatprep.subr.mxu0 0.0
      %796 = vmatpush2.msra.mxu0 0.0
      %797 = vmatprep.mubr.f32.mxu0 0.0
      %798 = vmatmul.mubr.f32.gmra.mxu0 %v710
      %v799 = vpop.f32.mrf.mxu0
      %v800 = vadd.f32 0.0, %v799
      %v801 = vpop.f32.mrf.mxu0
      %802 = vmatprep.mubr.f32.mxu0 0.0
      %803 = vmatmul.mubr.f32.gmra.mxu0 %v713
      %v804 = vpop.f32.mrf.mxu0
      %v805 = vadd.f32 0.0, %v804
      %v806 = vpop.f32.mrf.mxu0
      %807 = vmatprep.mubr.f32.mxu0 0.0
      %808 = vmatmul.mubr.f32.gmra.mxu0 %v716
      %v809 = vpop.f32.mrf.mxu0
      %v810 = vadd.f32 0.0, %v809
      %v811 = vpop.f32.mrf.mxu0
      %812 = vmatprep.mubr.f32.mxu0 0.0
      %813 = vmatmul.mubr.f32.gmra.mxu0 %v719
      %v814 = vpop.f32.mrf.mxu0
      %v815 = vadd.f32 0.0, %v814
      %v816 = vpop.f32.mrf.mxu0
      %817 = vmatprep.mubr.f32.mxu0 0.0
      %818 = vmatmul.mubr.f32.gmra.mxu0 %v722
      %v819 = vpop.f32.mrf.mxu0
      %v820 = vadd.f32 0.0, %v819
      %v821 = vpop.f32.mrf.mxu0
      %822 = vmatprep.mubr.f32.mxu0 0.0
      %823 = vmatmul.mubr.f32.gmra.mxu0 %v725
      %v824 = vpop.f32.mrf.mxu0
      %v825 = vadd.f32 0.0, %v824
      %v826 = vpop.f32.mrf.mxu0
      %827 = vmatprep.mubr.f32.mxu0 0.0
      %828 = vmatmul.mubr.f32.gmra.mxu0 %v728
      %v829 = vpop.f32.mrf.mxu0
      %v830 = vadd.f32 0.0, %v829
      %v831 = vpop.f32.mrf.mxu0
      %832 = vmatprep.mubr.f32.mxu0 0.0
      %833 = vmatmul.mubr.f32.gmra.mxu0 %v731
      %v834 = vpop.f32.mrf.mxu0
      %v835 = vadd.f32 0.0, %v834
      %v836 = vpop.f32.mrf.mxu0
      %837 = vdwg.mxu0
      %v838 = vld [vmem:[%s4] sm:$0xff]
      %839 = vrot.lane.b32.xlu0 %v418, 120
      %v840 = vpop.permute.xlu0 %839
      %841 = vrot.lane.b32.xlu0 %v419, 120
      %v842 = vpop.permute.xlu0 %841
      %843 = vrot.lane.b32.xlu0 %v420, 120
      %v844 = vpop.permute.xlu0 %843
      %845 = vrot.lane.b32.xlu0 %v421, 120
      %v846 = vpop.permute.xlu0 %845
      %847 = vrot.lane.b32.xlu0 %v422, 120
      %v848 = vpop.permute.xlu0 %847
      %849 = vrot.lane.b32.xlu0 %v423, 120
      %v850 = vpop.permute.xlu0 %849
      %851 = vrot.lane.b32.xlu0 %v424, 120
      %v852 = vpop.permute.xlu0 %851
      %853 = vrot.lane.b32.xlu0 %v425, 120
      %v854 = vpop.permute.xlu0 %853
      %855 = vrot.lane.b32.xlu0 %v379, 88
      %v856 = vpop.permute.xlu0 %855
      %857 = vrot.lane.b32.xlu0 %v384, 88
      %v858 = vpop.permute.xlu0 %857
      %859 = vrot.lane.b32.xlu0 %v389, 88
      %v860 = vpop.permute.xlu0 %859
      %861 = vrot.lane.b32.xlu0 %v394, 88
      %v862 = vpop.permute.xlu0 %861
      %863 = vrot.lane.b32.xlu0 %v399, 88
      %v864 = vpop.permute.xlu0 %863
      %865 = vrot.lane.b32.xlu0 %v404, 88
      %v866 = vpop.permute.xlu0 %865
      %867 = vrot.lane.b32.xlu0 %v409, 88
      %v868 = vpop.permute.xlu0 %867
      %869 = vrot.lane.b32.xlu0 %v414, 88
      %v870 = vpop.permute.xlu0 %869
      %v871 = vsel %vm450, %v840, 0
      %v873 = vsel %vm450, %v842, 0
      %v875 = vsel %vm450, %v844, 0
      %v877 = vsel %vm450, %v846, 0
      %v879 = vsel %vm450, %v848, 0
      %v881 = vsel %vm450, %v850, 0
      %v883 = vsel %vm450, %v852, 0
      %v885 = vsel %vm450, %v854, 0
      %v887 = vsel %vm450, %v856, 0
      %v889 = vsel %vm450, %v858, 0
      %v891 = vsel %vm450, %v860, 0
      %v893 = vsel %vm450, %v862, 0
      %v895 = vsel %vm450, %v864, 0
      %v897 = vsel %vm450, %v866, 0
      %v899 = vsel %vm450, %v868, 0
      %v901 = vsel %vm450, %v870, 0
      %903 = vmatprep.subr.mxu0 0.0
      %904 = vmatpush1.xpose.msra.mxu0 0.0
      %905 = vmatprep.subr.mxu0 0.0
      %906 = vmatpush1.xpose.msra.mxu0 0.0
      %907 = vmatprep.subr.mxu0 0.0
      %908 = vmatpush1.xpose.msra.mxu0 0.0
      %909 = vmatprep.subr.mxu0 0.0
      %910 = vmatpush1.xpose.msra.mxu0 0.0
      %911 = vmatprep.subr.mxu0 0.0
      %912 = vmatpush1.xpose.msra.mxu0 0.0
      %913 = vmatprep.subr.mxu0 0.0
      %914 = vmatpush1.xpose.msra.mxu0 0.0
      %915 = vmatprep.subr.mxu0 0.0
      %916 = vmatpush1.xpose.msra.mxu0 0.0
      %917 = vmatprep.subr.mxu0 0.0
      %918 = vmatpush1.xpose.msra.mxu0 0.0
      %919 = vmatprep.subr.mxu0 0.0
      %920 = vmatpush1.xpose.msra.mxu0 %v901
      %921 = vmatprep.subr.mxu0 0.0
      %922 = vmatpush1.xpose.msra.mxu0 %v899
      %923 = vmatprep.subr.mxu0 0.0
      %924 = vmatpush1.xpose.msra.mxu0 %v897
      %925 = vmatprep.subr.mxu0 0.0
      %926 = vmatpush1.xpose.msra.mxu0 %v895
      %927 = vmatprep.subr.mxu0 0.0
      %928 = vmatpush1.xpose.msra.mxu0 %v893
      %929 = vmatprep.subr.mxu0 0.0
      %930 = vmatpush1.xpose.msra.mxu0 %v891
      %931 = vmatprep.subr.mxu0 0.0
      %932 = vmatpush1.xpose.msra.mxu0 %v889
      %933 = vmatprep.subr.mxu0 0.0
      %934 = vmatpush1.xpose.msra.mxu0 %v887
      %935 = vmatprep.subr.mxu0 0.0
      %936 = vmatpush2.xpose.msra.mxu0 0.0
      %937 = vmatprep.subr.mxu0 0.0
      %938 = vmatpush2.xpose.msra.mxu0 0.0
      %939 = vmatprep.subr.mxu0 0.0
      %940 = vmatpush2.xpose.msra.mxu0 0.0
      %941 = vmatprep.subr.mxu0 0.0
      %942 = vmatpush2.xpose.msra.mxu0 0.0
      %943 = vmatprep.subr.mxu0 0.0
      %944 = vmatpush2.xpose.msra.mxu0 0.0
      %945 = vmatprep.subr.mxu0 0.0
      %946 = vmatpush2.xpose.msra.mxu0 0.0
      %947 = vmatprep.subr.mxu0 0.0
      %948 = vmatpush2.xpose.msra.mxu0 0.0
      %949 = vmatprep.subr.mxu0 0.0
      %950 = vmatpush2.xpose.msra.mxu0 0.0
      %951 = vmatprep.subr.mxu0 0.0
      %952 = vmatpush2.xpose.msra.mxu0 0.0
      %953 = vmatprep.subr.mxu0 0.0
      %954 = vmatpush2.xpose.msra.mxu0 0.0
      %955 = vmatprep.subr.mxu0 0.0
      %956 = vmatpush2.xpose.msra.mxu0 0.0
      %957 = vmatprep.subr.mxu0 0.0
      %958 = vmatpush2.xpose.msra.mxu0 0.0
      %959 = vmatprep.subr.mxu0 0.0
      %960 = vmatpush2.xpose.msra.mxu0 0.0
      %961 = vmatprep.subr.mxu0 0.0
      %962 = vmatpush2.xpose.msra.mxu0 0.0
      %963 = vmatprep.subr.mxu0 0.0
      %964 = vmatpush2.xpose.msra.mxu0 0.0
      %965 = vmatprep.subr.mxu0 0.0
      %966 = vmatpush2.xpose.msra.mxu0 0.0
      %967 = vmatprep.mubr.f32.mxu0 0.0
      %968 = vmatmul.mubr.f32.gmra.mxu0 %v871
      %v969 = vpop.f32.mrf.mxu0
      %v970 = vadd.f32 0.0, %v969
      %v971 = vpop.f32.mrf.mxu0
      %972 = vmatprep.mubr.f32.mxu0 0.0
      %973 = vmatmul.mubr.f32.gmra.mxu0 %v873
      %v974 = vpop.f32.mrf.mxu0
      %v975 = vadd.f32 0.0, %v974
      %v976 = vpop.f32.mrf.mxu0
      %977 = vmatprep.mubr.f32.mxu0 0.0
      %978 = vmatmul.mubr.f32.gmra.mxu0 %v875
      %v979 = vpop.f32.mrf.mxu0
      %v980 = vadd.f32 0.0, %v979
      %v981 = vpop.f32.mrf.mxu0
      %982 = vmatprep.mubr.f32.mxu0 0.0
      %983 = vmatmul.mubr.f32.gmra.mxu0 %v877
      %v984 = vpop.f32.mrf.mxu0
      %v985 = vadd.f32 0.0, %v984
      %v986 = vpop.f32.mrf.mxu0
      %987 = vmatprep.mubr.f32.mxu0 0.0
      %988 = vmatmul.mubr.f32.gmra.mxu0 %v879
      %v989 = vpop.f32.mrf.mxu0
      %v990 = vadd.f32 0.0, %v989
      %v991 = vpop.f32.mrf.mxu0
      %992 = vmatprep.mubr.f32.mxu0 0.0
      %993 = vmatmul.mubr.f32.gmra.mxu0 %v881
      %v994 = vpop.f32.mrf.mxu0
      %v995 = vadd.f32 0.0, %v994
      %v996 = vpop.f32.mrf.mxu0
      %997 = vmatprep.mubr.f32.mxu0 0.0
      %998 = vmatmul.mubr.f32.gmra.mxu0 %v883
      %v999 = vpop.f32.mrf.mxu0
      %v1000 = vadd.f32 0.0, %v999
      %v1001 = vpop.f32.mrf.mxu0
      %1002 = vmatprep.mubr.f32.mxu0 0.0
      %1003 = vmatmul.mubr.f32.gmra.mxu0 %v885
      %v1004 = vpop.f32.mrf.mxu0
      %v1005 = vadd.f32 0.0, %v1004
      %v1006 = vpop.f32.mrf.mxu0
      %1007 = vdwg.mxu0
      %v1008 = vsel %vm596, %v970, -inf
      %1009 = vmax.xlane.f32.xlu0 %v1008
      %v1010 = vpop.xlane.xlu0 %1009
      %v1011 = vsel %vm596, %v975, -inf
      %1012 = vmax.xlane.f32.xlu0 %v1011
      %v1013 = vpop.xlane.xlu0 %1012
      %v1014 = vsel %vm596, %v980, -inf
      %1015 = vmax.xlane.f32.xlu0 %v1014
      %v1016 = vpop.xlane.xlu0 %1015
      %v1017 = vsel %vm596, %v985, -inf
      %1018 = vmax.xlane.f32.xlu0 %v1017
      %v1019 = vpop.xlane.xlu0 %1018
      %v1020 = vsel %vm596, %v990, -inf
      %1021 = vmax.xlane.f32.xlu0 %v1020
      %v1022 = vpop.xlane.xlu0 %1021
      %v1023 = vsel %vm596, %v995, -inf
      %1024 = vmax.xlane.f32.xlu0 %v1023
      %v1025 = vpop.xlane.xlu0 %1024
      %v1026 = vsel %vm596, %v1000, -inf
      %1027 = vmax.xlane.f32.xlu0 %v1026
      %v1028 = vpop.xlane.xlu0 %1027
      %v1029 = vsel %vm596, %v1005, -inf
      %1030 = vmax.xlane.f32.xlu0 %v1029
      %v1031 = vpop.xlane.xlu0 %1030
      %v1032 = vsub.f32 %v970, %v1010
      %v1033 = vsub.f32 %v975, %v1013
      %v1034 = vsub.f32 %v980, %v1016
      %v1035 = vsub.f32 %v985, %v1019
      %v1036 = vsub.f32 %v990, %v1022
      %v1037 = vsub.f32 %v995, %v1025
      %v1038 = vsub.f32 %v1000, %v1028
      %v1039 = vsub.f32 %v1005, %v1031
      %v1040 = vmul.f32 %v1032, 1.442695
      %v1041 = vpow.pop %v1040
      %v1042 = vmul.f32 %v1033, 1.442695
      %v1043 = vpow.pop %v1042
      %v1044 = vmul.f32 %v1034, 1.442695
      %v1045 = vpow.pop %v1044
      %v1046 = vmul.f32 %v1035, 1.442695
      %v1047 = vpow.pop %v1046
      %v1048 = vmul.f32 %v1036, 1.442695
      %v1049 = vpow.pop %v1048
      %v1050 = vmul.f32 %v1037, 1.442695
      %v1051 = vpow.pop %v1050
      %v1052 = vmul.f32 %v1038, 1.442695
      %v1053 = vpow.pop %v1052
      %v1054 = vmul.f32 %v1039, 1.442695
      %v1055 = vpow.pop %v1054
      %v1056 = vsel %vm596, %v1041, 0.0
      %1057 = vadd.xlane.f32.xlu0 %v1056
      %v1058 = vpop.xlane.xlu0 %1057
      %v1059 = vsel %vm596, %v1043, 0.0
      %1060 = vadd.xlane.f32.xlu0 %v1059
      %v1061 = vpop.xlane.xlu0 %1060
      %v1062 = vsel %vm596, %v1045, 0.0
      %1063 = vadd.xlane.f32.xlu0 %v1062
      %v1064 = vpop.xlane.xlu0 %1063
      %v1065 = vsel %vm596, %v1047, 0.0
      %1066 = vadd.xlane.f32.xlu0 %v1065
      %v1067 = vpop.xlane.xlu0 %1066
      %v1068 = vsel %vm596, %v1049, 0.0
      %1069 = vadd.xlane.f32.xlu0 %v1068
      %v1070 = vpop.xlane.xlu0 %1069
      %v1071 = vsel %vm596, %v1051, 0.0
      %1072 = vadd.xlane.f32.xlu0 %v1071
      %v1073 = vpop.xlane.xlu0 %1072
      %v1074 = vsel %vm596, %v1053, 0.0
      %1075 = vadd.xlane.f32.xlu0 %v1074
      %v1076 = vpop.xlane.xlu0 %1075
      %v1077 = vsel %vm596, %v1055, 0.0
      %1078 = vadd.xlane.f32.xlu0 %v1077
      %v1079 = vpop.xlane.xlu0 %1078
      %v1080 = vrcp.pop %v1058
      %v1081 = vrcp.pop %v1061
      %v1082 = vrcp.pop %v1064
      %v1083 = vrcp.pop %v1067
      %v1084 = vrcp.pop %v1070
      %v1085 = vrcp.pop %v1073
      %v1086 = vrcp.pop %v1076
      %v1087 = vrcp.pop %v1079
      %v1088 = vmul.f32 %v1041, %v1080
      %v1089 = vmul.f32 %v1043, %v1081
      %v1090 = vmul.f32 %v1045, %v1082
      %v1091 = vmul.f32 %v1047, %v1083
      %v1092 = vmul.f32 %v1049, %v1084
      %v1093 = vmul.f32 %v1051, %v1085
      %v1094 = vmul.f32 %v1053, %v1086
      %v1095 = vmul.f32 %v1055, %v1087
      %1096 = vrot.lane.b32.xlu0 %v379, 56
      %v1097 = vpop.permute.xlu0 %1096
      %1098 = vrot.lane.b32.xlu0 %v384, 56
      %v1099 = vpop.permute.xlu0 %1098
      %1100 = vrot.lane.b32.xlu0 %v389, 56
      %v1101 = vpop.permute.xlu0 %1100
      %1102 = vrot.lane.b32.xlu0 %v394, 56
      %v1103 = vpop.permute.xlu0 %1102
      %1104 = vrot.lane.b32.xlu0 %v399, 56
      %v1105 = vpop.permute.xlu0 %1104
      %1106 = vrot.lane.b32.xlu0 %v404, 56
      %v1107 = vpop.permute.xlu0 %1106
      %1108 = vrot.lane.b32.xlu0 %v409, 56
      %v1109 = vpop.permute.xlu0 %1108
      %1110 = vrot.lane.b32.xlu0 %v414, 56
      %v1111 = vpop.permute.xlu0 %1110
      %v1121 = vsel %vm596, %v1088, 0
      %v1124 = vsel %vm596, %v1089, 0
      %v1127 = vsel %vm596, %v1090, 0
      %v1130 = vsel %vm596, %v1091, 0
      %v1133 = vsel %vm596, %v1092, 0
      %v1136 = vsel %vm596, %v1093, 0
      %v1139 = vsel %vm596, %v1094, 0
      %v1142 = vsel %vm596, %v1095, 0
      %1144 = vmatprep.subr.mxu0 0.0
      %1145 = vmatpush1.msra.mxu0 0.0
      %1146 = vmatprep.subr.mxu0 0.0
      %1147 = vmatpush1.msra.mxu0 0.0
      %1148 = vmatprep.subr.mxu0 0.0
      %1149 = vmatpush1.msra.mxu0 0.0
      %1150 = vmatprep.subr.mxu0 0.0
      %1151 = vmatpush1.msra.mxu0 0.0
      %1152 = vmatprep.subr.mxu0 0.0
      %1153 = vmatpush1.msra.mxu0 0.0
      %1154 = vmatprep.subr.mxu0 0.0
      %1155 = vmatpush1.msra.mxu0 0.0
      %1156 = vmatprep.subr.mxu0 0.0
      %1157 = vmatpush1.msra.mxu0 0.0
      %1158 = vmatprep.subr.mxu0 0.0
      %1159 = vmatpush1.msra.mxu0 0.0
      %1160 = vmatprep.subr.mxu0 0.0
      %1161 = vmatpush1.msra.mxu0 %v1111
      %1162 = vmatprep.subr.mxu0 0.0
      %1163 = vmatpush1.msra.mxu0 %v1109
      %1164 = vmatprep.subr.mxu0 0.0
      %1165 = vmatpush1.msra.mxu0 %v1107
      %1166 = vmatprep.subr.mxu0 0.0
      %1167 = vmatpush1.msra.mxu0 %v1105
      %1168 = vmatprep.subr.mxu0 0.0
      %1169 = vmatpush1.msra.mxu0 %v1103
      %1170 = vmatprep.subr.mxu0 0.0
      %1171 = vmatpush1.msra.mxu0 %v1101
      %1172 = vmatprep.subr.mxu0 0.0
      %1173 = vmatpush1.msra.mxu0 %v1099
      %1174 = vmatprep.subr.mxu0 0.0
      %1175 = vmatpush1.msra.mxu0 %v1097
      %1176 = vmatprep.subr.mxu0 0.0
      %1177 = vmatpush2.msra.mxu0 0.0
      %1178 = vmatprep.subr.mxu0 0.0
      %1179 = vmatpush2.msra.mxu0 0.0
      %1180 = vmatprep.subr.mxu0 0.0
      %1181 = vmatpush2.msra.mxu0 0.0
      %1182 = vmatprep.subr.mxu0 0.0
      %1183 = vmatpush2.msra.mxu0 0.0
      %1184 = vmatprep.subr.mxu0 0.0
      %1185 = vmatpush2.msra.mxu0 0.0
      %1186 = vmatprep.subr.mxu0 0.0
      %1187 = vmatpush2.msra.mxu0 0.0
      %1188 = vmatprep.subr.mxu0 0.0
      %1189 = vmatpush2.msra.mxu0 0.0
      %1190 = vmatprep.subr.mxu0 0.0
      %1191 = vmatpush2.msra.mxu0 0.0
      %1192 = vmatprep.subr.mxu0 0.0
      %1193 = vmatpush2.msra.mxu0 0.0
      %1194 = vmatprep.subr.mxu0 0.0
      %1195 = vmatpush2.msra.mxu0 0.0
      %1196 = vmatprep.subr.mxu0 0.0
      %1197 = vmatpush2.msra.mxu0 0.0
      %1198 = vmatprep.subr.mxu0 0.0
      %1199 = vmatpush2.msra.mxu0 0.0
      %1200 = vmatprep.subr.mxu0 0.0
      %1201 = vmatpush2.msra.mxu0 0.0
      %1202 = vmatprep.subr.mxu0 0.0
      %1203 = vmatpush2.msra.mxu0 0.0
      %1204 = vmatprep.subr.mxu0 0.0
      %1205 = vmatpush2.msra.mxu0 0.0
      %1206 = vmatprep.subr.mxu0 0.0
      %1207 = vmatpush2.msra.mxu0 0.0
      %1208 = vmatprep.mubr.f32.mxu0 0.0
      %1209 = vmatmul.mubr.f32.gmra.mxu0 %v1121
      %v1210 = vpop.f32.mrf.mxu0
      %v1211 = vadd.f32 0.0, %v1210
      %v1212 = vpop.f32.mrf.mxu0
      %1213 = vmatprep.mubr.f32.mxu0 0.0
      %1214 = vmatmul.mubr.f32.gmra.mxu0 %v1124
      %v1215 = vpop.f32.mrf.mxu0
      %v1216 = vadd.f32 0.0, %v1215
      %v1217 = vpop.f32.mrf.mxu0
      %1218 = vmatprep.mubr.f32.mxu0 0.0
      %1219 = vmatmul.mubr.f32.gmra.mxu0 %v1127
      %v1220 = vpop.f32.mrf.mxu0
      %v1221 = vadd.f32 0.0, %v1220
      %v1222 = vpop.f32.mrf.mxu0
      %1223 = vmatprep.mubr.f32.mxu0 0.0
      %1224 = vmatmul.mubr.f32.gmra.mxu0 %v1130
      %v1225 = vpop.f32.mrf.mxu0
      %v1226 = vadd.f32 0.0, %v1225
      %v1227 = vpop.f32.mrf.mxu0
      %1228 = vmatprep.mubr.f32.mxu0 0.0
      %1229 = vmatmul.mubr.f32.gmra.mxu0 %v1133
      %v1230 = vpop.f32.mrf.mxu0
      %v1231 = vadd.f32 0.0, %v1230
      %v1232 = vpop.f32.mrf.mxu0
      %1233 = vmatprep.mubr.f32.mxu0 0.0
      %1234 = vmatmul.mubr.f32.gmra.mxu0 %v1136
      %v1235 = vpop.f32.mrf.mxu0
      %v1236 = vadd.f32 0.0, %v1235
      %v1237 = vpop.f32.mrf.mxu0
      %1238 = vmatprep.mubr.f32.mxu0 0.0
      %1239 = vmatmul.mubr.f32.gmra.mxu0 %v1139
      %v1240 = vpop.f32.mrf.mxu0
      %v1241 = vadd.f32 0.0, %v1240
      %v1242 = vpop.f32.mrf.mxu0
      %1243 = vmatprep.mubr.f32.mxu0 0.0
      %1244 = vmatmul.mubr.f32.gmra.mxu0 %v1142
      %v1245 = vpop.f32.mrf.mxu0
      %v1246 = vadd.f32 0.0, %v1245
      %v1247 = vpop.f32.mrf.mxu0
      %1248 = vdwg.mxu0
      %v1249 = vld [vmem:[%s4 + $0x8] sm:$0xff]
      %v1251 = vsel %vm450, %v1211, 0
      %v1254 = vsel %vm450, %v1216, 0
      %v1257 = vsel %vm450, %v1221, 0
      %v1260 = vsel %vm450, %v1226, 0
      %v1263 = vsel %vm450, %v1231, 0
      %v1266 = vsel %vm450, %v1236, 0
      %v1269 = vsel %vm450, %v1241, 0
      %v1272 = vsel %vm450, %v1246, 0
      %1274 = vmatprep.subr.mxu0 0.0
      %1275 = vmatpush1.msra.mxu0 0.0
      %1276 = vmatprep.subr.mxu0 0.0
      %1277 = vmatpush1.msra.mxu0 0.0
      %1278 = vmatprep.subr.mxu0 0.0
      %1279 = vmatpush1.msra.mxu0 0.0
      %1280 = vmatprep.subr.mxu0 0.0
      %1281 = vmatpush1.msra.mxu0 0.0
      %1282 = vmatprep.subr.mxu0 0.0
      %1283 = vmatpush1.msra.mxu0 0.0
      %1284 = vmatprep.subr.mxu0 0.0
      %1285 = vmatpush1.msra.mxu0 0.0
      %1286 = vmatprep.subr.mxu0 0.0
      %1287 = vmatpush1.msra.mxu0 0.0
      %1288 = vmatprep.subr.mxu0 0.0
      %1289 = vmatpush1.msra.mxu0 0.0
      %1290 = vmatprep.subr.mxu0 0.0
      %1291 = vmatpush1.msra.mxu0 0.0
      %1292 = vmatprep.subr.mxu0 0.0
      %1293 = vmatpush1.msra.mxu0 0.0
      %1294 = vmatprep.subr.mxu0 0.0
      %1295 = vmatpush1.msra.mxu0 0.0
      %1296 = vmatprep.subr.mxu0 0.0
      %1297 = vmatpush1.msra.mxu0 0.0
      %1298 = vmatprep.subr.mxu0 0.0
      %1299 = vmatpush1.msra.mxu0 0.0
      %1300 = vmatprep.subr.mxu0 0.0
      %1301 = vmatpush1.msra.mxu0 0.0
      %1302 = vmatprep.subr.mxu0 0.0
      %1303 = vmatpush1.msra.mxu0 0.0
      %1304 = vmatprep.subr.mxu0 0.0
      %1305 = vmatpush1.msra.mxu0 %v1249
      %1306 = vmatprep.subr.mxu0 0.0
      %1307 = vmatpush2.msra.mxu0 0.0
      %1308 = vmatprep.subr.mxu0 0.0
      %1309 = vmatpush2.msra.mxu0 0.0
      %1310 = vmatprep.subr.mxu0 0.0
      %1311 = vmatpush2.msra.mxu0 0.0
      %1312 = vmatprep.subr.mxu0 0.0
      %1313 = vmatpush2.msra.mxu0 0.0
      %1314 = vmatprep.subr.mxu0 0.0
      %1315 = vmatpush2.msra.mxu0 0.0
      %1316 = vmatprep.subr.mxu0 0.0
      %1317 = vmatpush2.msra.mxu0 0.0
      %1318 = vmatprep.subr.mxu0 0.0
      %1319 = vmatpush2.msra.mxu0 0.0
      %1320 = vmatprep.subr.mxu0 0.0
      %1321 = vmatpush2.msra.mxu0 0.0
      %1322 = vmatprep.subr.mxu0 0.0
      %1323 = vmatpush2.msra.mxu0 0.0
      %1324 = vmatprep.subr.mxu0 0.0
      %1325 = vmatpush2.msra.mxu0 0.0
      %1326 = vmatprep.subr.mxu0 0.0
      %1327 = vmatpush2.msra.mxu0 0.0
      %1328 = vmatprep.subr.mxu0 0.0
      %1329 = vmatpush2.msra.mxu0 0.0
      %1330 = vmatprep.subr.mxu0 0.0
      %1331 = vmatpush2.msra.mxu0 0.0
      %1332 = vmatprep.subr.mxu0 0.0
      %1333 = vmatpush2.msra.mxu0 0.0
      %1334 = vmatprep.subr.mxu0 0.0
      %1335 = vmatpush2.msra.mxu0 0.0
      %1336 = vmatprep.subr.mxu0 0.0
      %1337 = vmatpush2.msra.mxu0 0.0
      %1338 = vmatprep.mubr.f32.mxu0 0.0
      %1339 = vmatmul.mubr.f32.gmra.mxu0 %v1251
      %v1340 = vpop.f32.mrf.mxu0
      %v1341 = vadd.f32 0.0, %v1340
      %v1342 = vpop.f32.mrf.mxu0
      %1343 = vmatprep.mubr.f32.mxu0 0.0
      %1344 = vmatmul.mubr.f32.gmra.mxu0 %v1254
      %v1345 = vpop.f32.mrf.mxu0
      %v1346 = vadd.f32 0.0, %v1345
      %v1347 = vpop.f32.mrf.mxu0
      %1348 = vmatprep.mubr.f32.mxu0 0.0
      %1349 = vmatmul.mubr.f32.gmra.mxu0 %v1257
      %v1350 = vpop.f32.mrf.mxu0
      %v1351 = vadd.f32 0.0, %v1350
      %v1352 = vpop.f32.mrf.mxu0
      %1353 = vmatprep.mubr.f32.mxu0 0.0
      %1354 = vmatmul.mubr.f32.gmra.mxu0 %v1260
      %v1355 = vpop.f32.mrf.mxu0
      %v1356 = vadd.f32 0.0, %v1355
      %v1357 = vpop.f32.mrf.mxu0
      %1358 = vmatprep.mubr.f32.mxu0 0.0
      %1359 = vmatmul.mubr.f32.gmra.mxu0 %v1263
      %v1360 = vpop.f32.mrf.mxu0
      %v1361 = vadd.f32 0.0, %v1360
      %v1362 = vpop.f32.mrf.mxu0
      %1363 = vmatprep.mubr.f32.mxu0 0.0
      %1364 = vmatmul.mubr.f32.gmra.mxu0 %v1266
      %v1365 = vpop.f32.mrf.mxu0
      %v1366 = vadd.f32 0.0, %v1365
      %v1367 = vpop.f32.mrf.mxu0
      %1368 = vmatprep.mubr.f32.mxu0 0.0
      %1369 = vmatmul.mubr.f32.gmra.mxu0 %v1269
      %v1370 = vpop.f32.mrf.mxu0
      %v1371 = vadd.f32 0.0, %v1370
      %v1372 = vpop.f32.mrf.mxu0
      %1373 = vmatprep.mubr.f32.mxu0 0.0
      %1374 = vmatmul.mubr.f32.gmra.mxu0 %v1272
      %v1375 = vpop.f32.mrf.mxu0
      %v1376 = vadd.f32 0.0, %v1375
      %v1377 = vpop.f32.mrf.mxu0
      %1378 = vdwg.mxu0
      %v1380 = vsel %vm450, %v800, 0
      %v1383 = vsel %vm450, %v805, 0
      %v1386 = vsel %vm450, %v810, 0
      %v1389 = vsel %vm450, %v815, 0
      %v1392 = vsel %vm450, %v820, 0
      %v1395 = vsel %vm450, %v825, 0
      %v1398 = vsel %vm450, %v830, 0
      %v1401 = vsel %vm450, %v835, 0
      %1403 = vmatprep.subr.mxu0 0.0
      %1404 = vmatpush1.msra.mxu0 0.0
      %1405 = vmatprep.subr.mxu0 0.0
      %1406 = vmatpush1.msra.mxu0 0.0
      %1407 = vmatprep.subr.mxu0 0.0
      %1408 = vmatpush1.msra.mxu0 0.0
      %1409 = vmatprep.subr.mxu0 0.0
      %1410 = vmatpush1.msra.mxu0 0.0
      %1411 = vmatprep.subr.mxu0 0.0
      %1412 = vmatpush1.msra.mxu0 0.0
      %1413 = vmatprep.subr.mxu0 0.0
      %1414 = vmatpush1.msra.mxu0 0.0
      %1415 = vmatprep.subr.mxu0 0.0
      %1416 = vmatpush1.msra.mxu0 0.0
      %1417 = vmatprep.subr.mxu0 0.0
      %1418 = vmatpush1.msra.mxu0 0.0
      %1419 = vmatprep.subr.mxu0 0.0
      %1420 = vmatpush1.msra.mxu0 0.0
      %1421 = vmatprep.subr.mxu0 0.0
      %1422 = vmatpush1.msra.mxu0 0.0
      %1423 = vmatprep.subr.mxu0 0.0
      %1424 = vmatpush1.msra.mxu0 0.0
      %1425 = vmatprep.subr.mxu0 0.0
      %1426 = vmatpush1.msra.mxu0 0.0
      %1427 = vmatprep.subr.mxu0 0.0
      %1428 = vmatpush1.msra.mxu0 0.0
      %1429 = vmatprep.subr.mxu0 0.0
      %1430 = vmatpush1.msra.mxu0 0.0
      %1431 = vmatprep.subr.mxu0 0.0
      %1432 = vmatpush1.msra.mxu0 0.0
      %1433 = vmatprep.subr.mxu0 0.0
      %1434 = vmatpush1.msra.mxu0 %v838
      %1435 = vmatprep.subr.mxu0 0.0
      %1436 = vmatpush2.msra.mxu0 0.0
      %1437 = vmatprep.subr.mxu0 0.0
      %1438 = vmatpush2.msra.mxu0 0.0
      %1439 = vmatprep.subr.mxu0 0.0
      %1440 = vmatpush2.msra.mxu0 0.0
      %1441 = vmatprep.subr.mxu0 0.0
      %1442 = vmatpush2.msra.mxu0 0.0
      %1443 = vmatprep.subr.mxu0 0.0
      %1444 = vmatpush2.msra.mxu0 0.0
      %1445 = vmatprep.subr.mxu0 0.0
      %1446 = vmatpush2.msra.mxu0 0.0
      %1447 = vmatprep.subr.mxu0 0.0
      %1448 = vmatpush2.msra.mxu0 0.0
      %1449 = vmatprep.subr.mxu0 0.0
      %1450 = vmatpush2.msra.mxu0 0.0
      %1451 = vmatprep.subr.mxu0 0.0
      %1452 = vmatpush2.msra.mxu0 0.0
      %1453 = vmatprep.subr.mxu0 0.0
      %1454 = vmatpush2.msra.mxu0 0.0
      %1455 = vmatprep.subr.mxu0 0.0
      %1456 = vmatpush2.msra.mxu0 0.0
      %1457 = vmatprep.subr.mxu0 0.0
      %1458 = vmatpush2.msra.mxu0 0.0
      %1459 = vmatprep.subr.mxu0 0.0
      %1460 = vmatpush2.msra.mxu0 0.0
      %1461 = vmatprep.subr.mxu0 0.0
      %1462 = vmatpush2.msra.mxu0 0.0
      %1463 = vmatprep.subr.mxu0 0.0
      %1464 = vmatpush2.msra.mxu0 0.0
      %1465 = vmatprep.subr.mxu0 0.0
      %1466 = vmatpush2.msra.mxu0 0.0
      %1467 = vmatprep.mubr.f32.mxu0 0.0
      %1468 = vmatmul.mubr.f32.gmra.mxu0 %v1380
      %v1469 = vpop.f32.mrf.mxu0
      %v1470 = vadd.f32 %v1341, %v1469
      %v1471 = vpop.f32.mrf.mxu0
      %1472 = vmatprep.mubr.f32.mxu0 0.0
      %1473 = vmatmul.mubr.f32.gmra.mxu0 %v1383
      %v1474 = vpop.f32.mrf.mxu0
      %v1475 = vadd.f32 %v1346, %v1474
      %v1476 = vpop.f32.mrf.mxu0
      %1477 = vmatprep.mubr.f32.mxu0 0.0
      %1478 = vmatmul.mubr.f32.gmra.mxu0 %v1386
      %v1479 = vpop.f32.mrf.mxu0
      %v1480 = vadd.f32 %v1351, %v1479
      %v1481 = vpop.f32.mrf.mxu0
      %1482 = vmatprep.mubr.f32.mxu0 0.0
      %1483 = vmatmul.mubr.f32.gmra.mxu0 %v1389
      %v1484 = vpop.f32.mrf.mxu0
      %v1485 = vadd.f32 %v1356, %v1484
      %v1486 = vpop.f32.mrf.mxu0
      %1487 = vmatprep.mubr.f32.mxu0 0.0
      %1488 = vmatmul.mubr.f32.gmra.mxu0 %v1392
      %v1489 = vpop.f32.mrf.mxu0
      %v1490 = vadd.f32 %v1361, %v1489
      %v1491 = vpop.f32.mrf.mxu0
      %1492 = vmatprep.mubr.f32.mxu0 0.0
      %1493 = vmatmul.mubr.f32.gmra.mxu0 %v1395
      %v1494 = vpop.f32.mrf.mxu0
      %v1495 = vadd.f32 %v1366, %v1494
      %v1496 = vpop.f32.mrf.mxu0
      %1497 = vmatprep.mubr.f32.mxu0 0.0
      %1498 = vmatmul.mubr.f32.gmra.mxu0 %v1398
      %v1499 = vpop.f32.mrf.mxu0
      %v1500 = vadd.f32 %v1371, %v1499
      %v1501 = vpop.f32.mrf.mxu0
      %1502 = vmatprep.mubr.f32.mxu0 0.0
      %1503 = vmatmul.mubr.f32.gmra.mxu0 %v1401
      %v1504 = vpop.f32.mrf.mxu0
      %v1505 = vadd.f32 %v1376, %v1504
      %v1506 = vpop.f32.mrf.mxu0
      %1507 = vdwg.mxu0
      %1508 = vrot.lane.b32.xlu0 %v418, 112
      %v1509 = vpop.permute.xlu0 %1508
      %1510 = vrot.lane.b32.xlu0 %v419, 112
      %v1511 = vpop.permute.xlu0 %1510
      %1512 = vrot.lane.b32.xlu0 %v420, 112
      %v1513 = vpop.permute.xlu0 %1512
      %1514 = vrot.lane.b32.xlu0 %v421, 112
      %v1515 = vpop.permute.xlu0 %1514
      %1516 = vrot.lane.b32.xlu0 %v422, 112
      %v1517 = vpop.permute.xlu0 %1516
      %1518 = vrot.lane.b32.xlu0 %v423, 112
      %v1519 = vpop.permute.xlu0 %1518
      %1520 = vrot.lane.b32.xlu0 %v424, 112
      %v1521 = vpop.permute.xlu0 %1520
      %1522 = vrot.lane.b32.xlu0 %v425, 112
      %v1523 = vpop.permute.xlu0 %1522
      %1524 = vrot.lane.b32.xlu0 %v379, 80
      %v1525 = vpop.permute.xlu0 %1524
      %1526 = vrot.lane.b32.xlu0 %v384, 80
      %v1527 = vpop.permute.xlu0 %1526
      %1528 = vrot.lane.b32.xlu0 %v389, 80
      %v1529 = vpop.permute.xlu0 %1528
      %1530 = vrot.lane.b32.xlu0 %v394, 80
      %v1531 = vpop.permute.xlu0 %1530
      %1532 = vrot.lane.b32.xlu0 %v399, 80
      %v1533 = vpop.permute.xlu0 %1532
      %1534 = vrot.lane.b32.xlu0 %v404, 80
      %v1535 = vpop.permute.xlu0 %1534
      %1536 = vrot.lane.b32.xlu0 %v409, 80
      %v1537 = vpop.permute.xlu0 %1536
      %1538 = vrot.lane.b32.xlu0 %v414, 80
      %v1539 = vpop.permute.xlu0 %1538
      %v1540 = vsel %vm450, %v1509, 0
      %v1542 = vsel %vm450, %v1511, 0
      %v1544 = vsel %vm450, %v1513, 0
      %v1546 = vsel %vm450, %v1515, 0
      %v1548 = vsel %vm450, %v1517, 0
      %v1550 = vsel %vm450, %v1519, 0
      %v1552 = vsel %vm450, %v1521, 0
      %v1554 = vsel %vm450, %v1523, 0
      %v1556 = vsel %vm450, %v1525, 0
      %v1558 = vsel %vm450, %v1527, 0
      %v1560 = vsel %vm450, %v1529, 0
      %v1562 = vsel %vm450, %v1531, 0
      %v1564 = vsel %vm450, %v1533, 0
      %v1566 = vsel %vm450, %v1535, 0
      %v1568 = vsel %vm450, %v1537, 0
      %v1570 = vsel %vm450, %v1539, 0
      %1572 = vmatprep.subr.mxu0 0.0
      %1573 = vmatpush1.xpose.msra.mxu0 0.0
      %1574 = vmatprep.subr.mxu0 0.0
      %1575 = vmatpush1.xpose.msra.mxu0 0.0
      %1576 = vmatprep.subr.mxu0 0.0
      %1577 = vmatpush1.xpose.msra.mxu0 0.0
      %1578 = vmatprep.subr.mxu0 0.0
      %1579 = vmatpush1.xpose.msra.mxu0 0.0
      %1580 = vmatprep.subr.mxu0 0.0
      %1581 = vmatpush1.xpose.msra.mxu0 0.0
      %1582 = vmatprep.subr.mxu0 0.0
      %1583 = vmatpush1.xpose.msra.mxu0 0.0
      %1584 = vmatprep.subr.mxu0 0.0
      %1585 = vmatpush1.xpose.msra.mxu0 0.0
      %1586 = vmatprep.subr.mxu0 0.0
      %1587 = vmatpush1.xpose.msra.mxu0 0.0
      %1588 = vmatprep.subr.mxu0 0.0
      %1589 = vmatpush1.xpose.msra.mxu0 %v1570
      %1590 = vmatprep.subr.mxu0 0.0
      %1591 = vmatpush1.xpose.msra.mxu0 %v1568
      %1592 = vmatprep.subr.mxu0 0.0
      %1593 = vmatpush1.xpose.msra.mxu0 %v1566
      %1594 = vmatprep.subr.mxu0 0.0
      %1595 = vmatpush1.xpose.msra.mxu0 %v1564
      %1596 = vmatprep.subr.mxu0 0.0
      %1597 = vmatpush1.xpose.msra.mxu0 %v1562
      %1598 = vmatprep.subr.mxu0 0.0
      %1599 = vmatpush1.xpose.msra.mxu0 %v1560
      %1600 = vmatprep.subr.mxu0 0.0
      %1601 = vmatpush1.xpose.msra.mxu0 %v1558
      %1602 = vmatprep.subr.mxu0 0.0
      %1603 = vmatpush1.xpose.msra.mxu0 %v1556
      %1604 = vmatprep.subr.mxu0 0.0
      %1605 = vmatpush2.xpose.msra.mxu0 0.0
      %1606 = vmatprep.subr.mxu0 0.0
      %1607 = vmatpush2.xpose.msra.mxu0 0.0
      %1608 = vmatprep.subr.mxu0 0.0
      %1609 = vmatpush2.xpose.msra.mxu0 0.0
      %1610 = vmatprep.subr.mxu0 0.0
      %1611 = vmatpush2.xpose.msra.mxu0 0.0
      %1612 = vmatprep.subr.mxu0 0.0
      %1613 = vmatpush2.xpose.msra.mxu0 0.0
      %1614 = vmatprep.subr.mxu0 0.0
      %1615 = vmatpush2.xpose.msra.mxu0 0.0
      %1616 = vmatprep.subr.mxu0 0.0
      %1617 = vmatpush2.xpose.msra.mxu0 0.0
      %1618 = vmatprep.subr.mxu0 0.0
      %1619 = vmatpush2.xpose.msra.mxu0 0.0
      %1620 = vmatprep.subr.mxu0 0.0
      %1621 = vmatpush2.xpose.msra.mxu0 0.0
      %1622 = vmatprep.subr.mxu0 0.0
      %1623 = vmatpush2.xpose.msra.mxu0 0.0
      %1624 = vmatprep.subr.mxu0 0.0
      %1625 = vmatpush2.xpose.msra.mxu0 0.0
      %1626 = vmatprep.subr.mxu0 0.0
      %1627 = vmatpush2.xpose.msra.mxu0 0.0
      %1628 = vmatprep.subr.mxu0 0.0
      %1629 = vmatpush2.xpose.msra.mxu0 0.0
      %1630 = vmatprep.subr.mxu0 0.0
      %1631 = vmatpush2.xpose.msra.mxu0 0.0
      %1632 = vmatprep.subr.mxu0 0.0
      %1633 = vmatpush2.xpose.msra.mxu0 0.0
      %1634 = vmatprep.subr.mxu0 0.0
      %1635 = vmatpush2.xpose.msra.mxu0 0.0
      %1636 = vmatprep.mubr.f32.mxu0 0.0
      %1637 = vmatmul.mubr.f32.gmra.mxu0 %v1540
      %v1638 = vpop.f32.mrf.mxu0
      %v1639 = vadd.f32 0.0, %v1638
      %v1640 = vpop.f32.mrf.mxu0
      %1641 = vmatprep.mubr.f32.mxu0 0.0
      %1642 = vmatmul.mubr.f32.gmra.mxu0 %v1542
      %v1643 = vpop.f32.mrf.mxu0
      %v1644 = vadd.f32 0.0, %v1643
      %v1645 = vpop.f32.mrf.mxu0
      %1646 = vmatprep.mubr.f32.mxu0 0.0
      %1647 = vmatmul.mubr.f32.gmra.mxu0 %v1544
      %v1648 = vpop.f32.mrf.mxu0
      %v1649 = vadd.f32 0.0, %v1648
      %v1650 = vpop.f32.mrf.mxu0
      %1651 = vmatprep.mubr.f32.mxu0 0.0
      %1652 = vmatmul.mubr.f32.gmra.mxu0 %v1546
      %v1653 = vpop.f32.mrf.mxu0
      %v1654 = vadd.f32 0.0, %v1653
      %v1655 = vpop.f32.mrf.mxu0
      %1656 = vmatprep.mubr.f32.mxu0 0.0
      %1657 = vmatmul.mubr.f32.gmra.mxu0 %v1548
      %v1658 = vpop.f32.mrf.mxu0
      %v1659 = vadd.f32 0.0, %v1658
      %v1660 = vpop.f32.mrf.mxu0
      %1661 = vmatprep.mubr.f32.mxu0 0.0
      %1662 = vmatmul.mubr.f32.gmra.mxu0 %v1550
      %v1663 = vpop.f32.mrf.mxu0
      %v1664 = vadd.f32 0.0, %v1663
      %v1665 = vpop.f32.mrf.mxu0
      %1666 = vmatprep.mubr.f32.mxu0 0.0
      %1667 = vmatmul.mubr.f32.gmra.mxu0 %v1552
      %v1668 = vpop.f32.mrf.mxu0
      %v1669 = vadd.f32 0.0, %v1668
      %v1670 = vpop.f32.mrf.mxu0
      %1671 = vmatprep.mubr.f32.mxu0 0.0
      %1672 = vmatmul.mubr.f32.gmra.mxu0 %v1554
      %v1673 = vpop.f32.mrf.mxu0
      %v1674 = vadd.f32 0.0, %v1673
      %v1675 = vpop.f32.mrf.mxu0
      %1676 = vdwg.mxu0
      %v1677 = vsel %vm596, %v1639, -inf
      %1678 = vmax.xlane.f32.xlu0 %v1677
      %v1679 = vpop.xlane.xlu0 %1678
      %v1680 = vsel %vm596, %v1644, -inf
      %1681 = vmax.xlane.f32.xlu0 %v1680
      %v1682 = vpop.xlane.xlu0 %1681
      %v1683 = vsel %vm596, %v1649, -inf
      %1684 = vmax.xlane.f32.xlu0 %v1683
      %v1685 = vpop.xlane.xlu0 %1684
      %v1686 = vsel %vm596, %v1654, -inf
      %1687 = vmax.xlane.f32.xlu0 %v1686
      %v1688 = vpop.xlane.xlu0 %1687
      %v1689 = vsel %vm596, %v1659, -inf
      %1690 = vmax.xlane.f32.xlu0 %v1689
      %v1691 = vpop.xlane.xlu0 %1690
      %v1692 = vsel %vm596, %v1664, -inf
      %1693 = vmax.xlane.f32.xlu0 %v1692
      %v1694 = vpop.xlane.xlu0 %1693
      %v1695 = vsel %vm596, %v1669, -inf
      %1696 = vmax.xlane.f32.xlu0 %v1695
      %v1697 = vpop.xlane.xlu0 %1696
      %v1698 = vsel %vm596, %v1674, -inf
      %1699 = vmax.xlane.f32.xlu0 %v1698
      %v1700 = vpop.xlane.xlu0 %1699
      %v1701 = vsub.f32 %v1639, %v1679
      %v1702 = vsub.f32 %v1644, %v1682
      %v1703 = vsub.f32 %v1649, %v1685
      %v1704 = vsub.f32 %v1654, %v1688
      %v1705 = vsub.f32 %v1659, %v1691
      %v1706 = vsub.f32 %v1664, %v1694
      %v1707 = vsub.f32 %v1669, %v1697
      %v1708 = vsub.f32 %v1674, %v1700
      %v1709 = vmul.f32 %v1701, 1.442695
      %v1710 = vpow.pop %v1709
      %v1711 = vmul.f32 %v1702, 1.442695
      %v1712 = vpow.pop %v1711
      %v1713 = vmul.f32 %v1703, 1.442695
      %v1714 = vpow.pop %v1713
      %v1715 = vmul.f32 %v1704, 1.442695
      %v1716 = vpow.pop %v1715
      %v1717 = vmul.f32 %v1705, 1.442695
      %v1718 = vpow.pop %v1717
      %v1719 = vmul.f32 %v1706, 1.442695
      %v1720 = vpow.pop %v1719
      %v1721 = vmul.f32 %v1707, 1.442695
      %v1722 = vpow.pop %v1721
      %v1723 = vmul.f32 %v1708, 1.442695
      %v1724 = vpow.pop %v1723
      %v1725 = vsel %vm596, %v1710, 0.0
      %1726 = vadd.xlane.f32.xlu0 %v1725
      %v1727 = vpop.xlane.xlu0 %1726
      %v1728 = vsel %vm596, %v1712, 0.0
      %1729 = vadd.xlane.f32.xlu0 %v1728
      %v1730 = vpop.xlane.xlu0 %1729
      %v1731 = vsel %vm596, %v1714, 0.0
      %1732 = vadd.xlane.f32.xlu0 %v1731
      %v1733 = vpop.xlane.xlu0 %1732
      %v1734 = vsel %vm596, %v1716, 0.0
      %1735 = vadd.xlane.f32.xlu0 %v1734
      %v1736 = vpop.xlane.xlu0 %1735
      %v1737 = vsel %vm596, %v1718, 0.0
      %1738 = vadd.xlane.f32.xlu0 %v1737
      %v1739 = vpop.xlane.xlu0 %1738
      %v1740 = vsel %vm596, %v1720, 0.0
      %1741 = vadd.xlane.f32.xlu0 %v1740
      %v1742 = vpop.xlane.xlu0 %1741
      %v1743 = vsel %vm596, %v1722, 0.0
      %1744 = vadd.xlane.f32.xlu0 %v1743
      %v1745 = vpop.xlane.xlu0 %1744
      %v1746 = vsel %vm596, %v1724, 0.0
      %1747 = vadd.xlane.f32.xlu0 %v1746
      %v1748 = vpop.xlane.xlu0 %1747
      %v1749 = vrcp.pop %v1727
      %v1750 = vrcp.pop %v1730
      %v1751 = vrcp.pop %v1733
      %v1752 = vrcp.pop %v1736
      %v1753 = vrcp.pop %v1739
      %v1754 = vrcp.pop %v1742
      %v1755 = vrcp.pop %v1745
      %v1756 = vrcp.pop %v1748
      %v1757 = vmul.f32 %v1710, %v1749
      %v1758 = vmul.f32 %v1712, %v1750
      %v1759 = vmul.f32 %v1714, %v1751
      %v1760 = vmul.f32 %v1716, %v1752
      %v1761 = vmul.f32 %v1718, %v1753
      %v1762 = vmul.f32 %v1720, %v1754
      %v1763 = vmul.f32 %v1722, %v1755
      %v1764 = vmul.f32 %v1724, %v1756
      %1765 = vrot.lane.b32.xlu0 %v379, 48
      %v1766 = vpop.permute.xlu0 %1765
      %1767 = vrot.lane.b32.xlu0 %v384, 48
      %v1768 = vpop.permute.xlu0 %1767
      %1769 = vrot.lane.b32.xlu0 %v389, 48
      %v1770 = vpop.permute.xlu0 %1769
      %1771 = vrot.lane.b32.xlu0 %v394, 48
      %v1772 = vpop.permute.xlu0 %1771
      %1773 = vrot.lane.b32.xlu0 %v399, 48
      %v1774 = vpop.permute.xlu0 %1773
      %1775 = vrot.lane.b32.xlu0 %v404, 48
      %v1776 = vpop.permute.xlu0 %1775
      %1777 = vrot.lane.b32.xlu0 %v409, 48
      %v1778 = vpop.permute.xlu0 %1777
      %1779 = vrot.lane.b32.xlu0 %v414, 48
      %v1780 = vpop.permute.xlu0 %1779
      %v1790 = vsel %vm596, %v1757, 0
      %v1793 = vsel %vm596, %v1758, 0
      %v1796 = vsel %vm596, %v1759, 0
      %v1799 = vsel %vm596, %v1760, 0
      %v1802 = vsel %vm596, %v1761, 0
      %v1805 = vsel %vm596, %v1762, 0
      %v1808 = vsel %vm596, %v1763, 0
      %v1811 = vsel %vm596, %v1764, 0
      %1813 = vmatprep.subr.mxu0 0.0
      %1814 = vmatpush1.msra.mxu0 0.0
      %1815 = vmatprep.subr.mxu0 0.0
      %1816 = vmatpush1.msra.mxu0 0.0
      %1817 = vmatprep.subr.mxu0 0.0
      %1818 = vmatpush1.msra.mxu0 0.0
      %1819 = vmatprep.subr.mxu0 0.0
      %1820 = vmatpush1.msra.mxu0 0.0
      %1821 = vmatprep.subr.mxu0 0.0
      %1822 = vmatpush1.msra.mxu0 0.0
      %1823 = vmatprep.subr.mxu0 0.0
      %1824 = vmatpush1.msra.mxu0 0.0
      %1825 = vmatprep.subr.mxu0 0.0
      %1826 = vmatpush1.msra.mxu0 0.0
      %1827 = vmatprep.subr.mxu0 0.0
      %1828 = vmatpush1.msra.mxu0 0.0
      %1829 = vmatprep.subr.mxu0 0.0
      %1830 = vmatpush1.msra.mxu0 %v1780
      %1831 = vmatprep.subr.mxu0 0.0
      %1832 = vmatpush1.msra.mxu0 %v1778
      %1833 = vmatprep.subr.mxu0 0.0
      %1834 = vmatpush1.msra.mxu0 %v1776
      %1835 = vmatprep.subr.mxu0 0.0
      %1836 = vmatpush1.msra.mxu0 %v1774
      %1837 = vmatprep.subr.mxu0 0.0
      %1838 = vmatpush1.msra.mxu0 %v1772
      %1839 = vmatprep.subr.mxu0 0.0
      %1840 = vmatpush1.msra.mxu0 %v1770
      %1841 = vmatprep.subr.mxu0 0.0
      %1842 = vmatpush1.msra.mxu0 %v1768
      %1843 = vmatprep.subr.mxu0 0.0
      %1844 = vmatpush1.msra.mxu0 %v1766
      %1845 = vmatprep.subr.mxu0 0.0
      %1846 = vmatpush2.msra.mxu0 0.0
      %1847 = vmatprep.subr.mxu0 0.0
      %1848 = vmatpush2.msra.mxu0 0.0
      %1849 = vmatprep.subr.mxu0 0.0
      %1850 = vmatpush2.msra.mxu0 0.0
      %1851 = vmatprep.subr.mxu0 0.0
      %1852 = vmatpush2.msra.mxu0 0.0
      %1853 = vmatprep.subr.mxu0 0.0
      %1854 = vmatpush2.msra.mxu0 0.0
      %1855 = vmatprep.subr.mxu0 0.0
      %1856 = vmatpush2.msra.mxu0 0.0
      %1857 = vmatprep.subr.mxu0 0.0
      %1858 = vmatpush2.msra.mxu0 0.0
      %1859 = vmatprep.subr.mxu0 0.0
      %1860 = vmatpush2.msra.mxu0 0.0
      %1861 = vmatprep.subr.mxu0 0.0
      %1862 = vmatpush2.msra.mxu0 0.0
      %1863 = vmatprep.subr.mxu0 0.0
      %1864 = vmatpush2.msra.mxu0 0.0
      %1865 = vmatprep.subr.mxu0 0.0
      %1866 = vmatpush2.msra.mxu0 0.0
      %1867 = vmatprep.subr.mxu0 0.0
      %1868 = vmatpush2.msra.mxu0 0.0
      %1869 = vmatprep.subr.mxu0 0.0
      %1870 = vmatpush2.msra.mxu0 0.0
      %1871 = vmatprep.subr.mxu0 0.0
      %1872 = vmatpush2.msra.mxu0 0.0
      %1873 = vmatprep.subr.mxu0 0.0
      %1874 = vmatpush2.msra.mxu0 0.0
      %1875 = vmatprep.subr.mxu0 0.0
      %1876 = vmatpush2.msra.mxu0 0.0
      %1877 = vmatprep.mubr.f32.mxu0 0.0
      %1878 = vmatmul.mubr.f32.gmra.mxu0 %v1790
      %v1879 = vpop.f32.mrf.mxu0
      %v1880 = vadd.f32 0.0, %v1879
      %v1881 = vpop.f32.mrf.mxu0
      %1882 = vmatprep.mubr.f32.mxu0 0.0
      %1883 = vmatmul.mubr.f32.gmra.mxu0 %v1793
      %v1884 = vpop.f32.mrf.mxu0
      %v1885 = vadd.f32 0.0, %v1884
      %v1886 = vpop.f32.mrf.mxu0
      %1887 = vmatprep.mubr.f32.mxu0 0.0
      %1888 = vmatmul.mubr.f32.gmra.mxu0 %v1796
      %v1889 = vpop.f32.mrf.mxu0
      %v1890 = vadd.f32 0.0, %v1889
      %v1891 = vpop.f32.mrf.mxu0
      %1892 = vmatprep.mubr.f32.mxu0 0.0
      %1893 = vmatmul.mubr.f32.gmra.mxu0 %v1799
      %v1894 = vpop.f32.mrf.mxu0
      %v1895 = vadd.f32 0.0, %v1894
      %v1896 = vpop.f32.mrf.mxu0
      %1897 = vmatprep.mubr.f32.mxu0 0.0
      %1898 = vmatmul.mubr.f32.gmra.mxu0 %v1802
      %v1899 = vpop.f32.mrf.mxu0
      %v1900 = vadd.f32 0.0, %v1899
      %v1901 = vpop.f32.mrf.mxu0
      %1902 = vmatprep.mubr.f32.mxu0 0.0
      %1903 = vmatmul.mubr.f32.gmra.mxu0 %v1805
      %v1904 = vpop.f32.mrf.mxu0
      %v1905 = vadd.f32 0.0, %v1904
      %v1906 = vpop.f32.mrf.mxu0
      %1907 = vmatprep.mubr.f32.mxu0 0.0
      %1908 = vmatmul.mubr.f32.gmra.mxu0 %v1808
      %v1909 = vpop.f32.mrf.mxu0
      %v1910 = vadd.f32 0.0, %v1909
      %v1911 = vpop.f32.mrf.mxu0
      %1912 = vmatprep.mubr.f32.mxu0 0.0
      %1913 = vmatmul.mubr.f32.gmra.mxu0 %v1811
      %v1914 = vpop.f32.mrf.mxu0
      %v1915 = vadd.f32 0.0, %v1914
      %v1916 = vpop.f32.mrf.mxu0
      %1917 = vdwg.mxu0
      %v1918 = vld [vmem:[%s4 + $0x10] sm:$0xff]
      %v1920 = vsel %vm450, %v1880, 0
      %v1923 = vsel %vm450, %v1885, 0
      %v1926 = vsel %vm450, %v1890, 0
      %v1929 = vsel %vm450, %v1895, 0
      %v1932 = vsel %vm450, %v1900, 0
      %v1935 = vsel %vm450, %v1905, 0
      %v1938 = vsel %vm450, %v1910, 0
      %v1941 = vsel %vm450, %v1915, 0
      %1943 = vmatprep.subr.mxu0 0.0
      %1944 = vmatpush1.msra.mxu0 0.0
      %1945 = vmatprep.subr.mxu0 0.0
      %1946 = vmatpush1.msra.mxu0 0.0
      %1947 = vmatprep.subr.mxu0 0.0
      %1948 = vmatpush1.msra.mxu0 0.0
      %1949 = vmatprep.subr.mxu0 0.0
      %1950 = vmatpush1.msra.mxu0 0.0
      %1951 = vmatprep.subr.mxu0 0.0
      %1952 = vmatpush1.msra.mxu0 0.0
      %1953 = vmatprep.subr.mxu0 0.0
      %1954 = vmatpush1.msra.mxu0 0.0
      %1955 = vmatprep.subr.mxu0 0.0
      %1956 = vmatpush1.msra.mxu0 0.0
      %1957 = vmatprep.subr.mxu0 0.0
      %1958 = vmatpush1.msra.mxu0 0.0
      %1959 = vmatprep.subr.mxu0 0.0
      %1960 = vmatpush1.msra.mxu0 0.0
      %1961 = vmatprep.subr.mxu0 0.0
      %1962 = vmatpush1.msra.mxu0 0.0
      %1963 = vmatprep.subr.mxu0 0.0
      %1964 = vmatpush1.msra.mxu0 0.0
      %1965 = vmatprep.subr.mxu0 0.0
      %1966 = vmatpush1.msra.mxu0 0.0
      %1967 = vmatprep.subr.mxu0 0.0
      %1968 = vmatpush1.msra.mxu0 0.0
      %1969 = vmatprep.subr.mxu0 0.0
      %1970 = vmatpush1.msra.mxu0 0.0
      %1971 = vmatprep.subr.mxu0 0.0
      %1972 = vmatpush1.msra.mxu0 0.0
      %1973 = vmatprep.subr.mxu0 0.0
      %1974 = vmatpush1.msra.mxu0 %v1918
      %1975 = vmatprep.subr.mxu0 0.0
      %1976 = vmatpush2.msra.mxu0 0.0
      %1977 = vmatprep.subr.mxu0 0.0
      %1978 = vmatpush2.msra.mxu0 0.0
      %1979 = vmatprep.subr.mxu0 0.0
      %1980 = vmatpush2.msra.mxu0 0.0
      %1981 = vmatprep.subr.mxu0 0.0
      %1982 = vmatpush2.msra.mxu0 0.0
      %1983 = vmatprep.subr.mxu0 0.0
      %1984 = vmatpush2.msra.mxu0 0.0
      %1985 = vmatprep.subr.mxu0 0.0
      %1986 = vmatpush2.msra.mxu0 0.0
      %1987 = vmatprep.subr.mxu0 0.0
      %1988 = vmatpush2.msra.mxu0 0.0
      %1989 = vmatprep.subr.mxu0 0.0
      %1990 = vmatpush2.msra.mxu0 0.0
      %1991 = vmatprep.subr.mxu0 0.0
      %1992 = vmatpush2.msra.mxu0 0.0
      %1993 = vmatprep.subr.mxu0 0.0
      %1994 = vmatpush2.msra.mxu0 0.0
      %1995 = vmatprep.subr.mxu0 0.0
      %1996 = vmatpush2.msra.mxu0 0.0
      %1997 = vmatprep.subr.mxu0 0.0
      %1998 = vmatpush2.msra.mxu0 0.0
      %1999 = vmatprep.subr.mxu0 0.0
      %2000 = vmatpush2.msra.mxu0 0.0
      %2001 = vmatprep.subr.mxu0 0.0
      %2002 = vmatpush2.msra.mxu0 0.0
      %2003 = vmatprep.subr.mxu0 0.0
      %2004 = vmatpush2.msra.mxu0 0.0
      %2005 = vmatprep.subr.mxu0 0.0
      %2006 = vmatpush2.msra.mxu0 0.0
      %2007 = vmatprep.mubr.f32.mxu0 0.0
      %2008 = vmatmul.mubr.f32.gmra.mxu0 %v1920
      %v2009 = vpop.f32.mrf.mxu0
      %v2010 = vadd.f32 0.0, %v2009
      %v2011 = vpop.f32.mrf.mxu0
      %2012 = vmatprep.mubr.f32.mxu0 0.0
      %2013 = vmatmul.mubr.f32.gmra.mxu0 %v1923
      %v2014 = vpop.f32.mrf.mxu0
      %v2015 = vadd.f32 0.0, %v2014
      %v2016 = vpop.f32.mrf.mxu0
      %2017 = vmatprep.mubr.f32.mxu0 0.0
      %2018 = vmatmul.mubr.f32.gmra.mxu0 %v1926
      %v2019 = vpop.f32.mrf.mxu0
      %v2020 = vadd.f32 0.0, %v2019
      %v2021 = vpop.f32.mrf.mxu0
      %2022 = vmatprep.mubr.f32.mxu0 0.0
      %2023 = vmatmul.mubr.f32.gmra.mxu0 %v1929
      %v2024 = vpop.f32.mrf.mxu0
      %v2025 = vadd.f32 0.0, %v2024
      %v2026 = vpop.f32.mrf.mxu0
      %2027 = vmatprep.mubr.f32.mxu0 0.0
      %2028 = vmatmul.mubr.f32.gmra.mxu0 %v1932
      %v2029 = vpop.f32.mrf.mxu0
      %v2030 = vadd.f32 0.0, %v2029
      %v2031 = vpop.f32.mrf.mxu0
      %2032 = vmatprep.mubr.f32.mxu0 0.0
      %2033 = vmatmul.mubr.f32.gmra.mxu0 %v1935
      %v2034 = vpop.f32.mrf.mxu0
      %v2035 = vadd.f32 0.0, %v2034
      %v2036 = vpop.f32.mrf.mxu0
      %2037 = vmatprep.mubr.f32.mxu0 0.0
      %2038 = vmatmul.mubr.f32.gmra.mxu0 %v1938
      %v2039 = vpop.f32.mrf.mxu0
      %v2040 = vadd.f32 0.0, %v2039
      %v2041 = vpop.f32.mrf.mxu0
      %2042 = vmatprep.mubr.f32.mxu0 0.0
      %2043 = vmatmul.mubr.f32.gmra.mxu0 %v1941
      %v2044 = vpop.f32.mrf.mxu0
      %v2045 = vadd.f32 0.0, %v2044
      %v2046 = vpop.f32.mrf.mxu0
      %2047 = vdwg.mxu0
      %v2048 = vadd.f32 %v1470, %v2010
      %v2049 = vadd.f32 %v1475, %v2015
      %v2050 = vadd.f32 %v1480, %v2020
      %v2051 = vadd.f32 %v1485, %v2025
      %v2052 = vadd.f32 %v1490, %v2030
      %v2053 = vadd.f32 %v1495, %v2035
      %v2054 = vadd.f32 %v1500, %v2040
      %v2055 = vadd.f32 %v1505, %v2045
      %2056 = vrot.lane.b32.xlu0 %v418, 104
      %v2057 = vpop.permute.xlu0 %2056
      %2058 = vrot.lane.b32.xlu0 %v419, 104
      %v2059 = vpop.permute.xlu0 %2058
      %2060 = vrot.lane.b32.xlu0 %v420, 104
      %v2061 = vpop.permute.xlu0 %2060
      %2062 = vrot.lane.b32.xlu0 %v421, 104
      %v2063 = vpop.permute.xlu0 %2062
      %2064 = vrot.lane.b32.xlu0 %v422, 104
      %v2065 = vpop.permute.xlu0 %2064
      %2066 = vrot.lane.b32.xlu0 %v423, 104
      %v2067 = vpop.permute.xlu0 %2066
      %2068 = vrot.lane.b32.xlu0 %v424, 104
      %v2069 = vpop.permute.xlu0 %2068
      %2070 = vrot.lane.b32.xlu0 %v425, 104
      %v2071 = vpop.permute.xlu0 %2070
      %2072 = vrot.lane.b32.xlu0 %v379, 72
      %v2073 = vpop.permute.xlu0 %2072
      %2074 = vrot.lane.b32.xlu0 %v384, 72
      %v2075 = vpop.permute.xlu0 %2074
      %2076 = vrot.lane.b32.xlu0 %v389, 72
      %v2077 = vpop.permute.xlu0 %2076
      %2078 = vrot.lane.b32.xlu0 %v394, 72
      %v2079 = vpop.permute.xlu0 %2078
      %2080 = vrot.lane.b32.xlu0 %v399, 72
      %v2081 = vpop.permute.xlu0 %2080
      %2082 = vrot.lane.b32.xlu0 %v404, 72
      %v2083 = vpop.permute.xlu0 %2082
      %2084 = vrot.lane.b32.xlu0 %v409, 72
      %v2085 = vpop.permute.xlu0 %2084
      %2086 = vrot.lane.b32.xlu0 %v414, 72
      %v2087 = vpop.permute.xlu0 %2086
      %v2088 = vsel %vm450, %v2057, 0
      %v2090 = vsel %vm450, %v2059, 0
      %v2092 = vsel %vm450, %v2061, 0
      %v2094 = vsel %vm450, %v2063, 0
      %v2096 = vsel %vm450, %v2065, 0
      %v2098 = vsel %vm450, %v2067, 0
      %v2100 = vsel %vm450, %v2069, 0
      %v2102 = vsel %vm450, %v2071, 0
      %v2104 = vsel %vm450, %v2073, 0
      %v2106 = vsel %vm450, %v2075, 0
      %v2108 = vsel %vm450, %v2077, 0
      %v2110 = vsel %vm450, %v2079, 0
      %v2112 = vsel %vm450, %v2081, 0
      %v2114 = vsel %vm450, %v2083, 0
      %v2116 = vsel %vm450, %v2085, 0
      %v2118 = vsel %vm450, %v2087, 0
      %2120 = vmatprep.subr.mxu0 0.0
      %2121 = vmatpush1.xpose.msra.mxu0 0.0
      %2122 = vmatprep.subr.mxu0 0.0
      %2123 = vmatpush1.xpose.msra.mxu0 0.0
      %2124 = vmatprep.subr.mxu0 0.0
      %2125 = vmatpush1.xpose.msra.mxu0 0.0
      %2126 = vmatprep.subr.mxu0 0.0
      %2127 = vmatpush1.xpose.msra.mxu0 0.0
      %2128 = vmatprep.subr.mxu0 0.0
      %2129 = vmatpush1.xpose.msra.mxu0 0.0
      %2130 = vmatprep.subr.mxu0 0.0
      %2131 = vmatpush1.xpose.msra.mxu0 0.0
      %2132 = vmatprep.subr.mxu0 0.0
      %2133 = vmatpush1.xpose.msra.mxu0 0.0
      %2134 = vmatprep.subr.mxu0 0.0
      %2135 = vmatpush1.xpose.msra.mxu0 0.0
      %2136 = vmatprep.subr.mxu0 0.0
      %2137 = vmatpush1.xpose.msra.mxu0 %v2118
      %2138 = vmatprep.subr.mxu0 0.0
      %2139 = vmatpush1.xpose.msra.mxu0 %v2116
      %2140 = vmatprep.subr.mxu0 0.0
      %2141 = vmatpush1.xpose.msra.mxu0 %v2114
      %2142 = vmatprep.subr.mxu0 0.0
      %2143 = vmatpush1.xpose.msra.mxu0 %v2112
      %2144 = vmatprep.subr.mxu0 0.0
      %2145 = vmatpush1.xpose.msra.mxu0 %v2110
      %2146 = vmatprep.subr.mxu0 0.0
      %2147 = vmatpush1.xpose.msra.mxu0 %v2108
      %2148 = vmatprep.subr.mxu0 0.0
      %2149 = vmatpush1.xpose.msra.mxu0 %v2106
      %2150 = vmatprep.subr.mxu0 0.0
      %2151 = vmatpush1.xpose.msra.mxu0 %v2104
      %2152 = vmatprep.subr.mxu0 0.0
      %2153 = vmatpush2.xpose.msra.mxu0 0.0
      %2154 = vmatprep.subr.mxu0 0.0
      %2155 = vmatpush2.xpose.msra.mxu0 0.0
      %2156 = vmatprep.subr.mxu0 0.0
      %2157 = vmatpush2.xpose.msra.mxu0 0.0
      %2158 = vmatprep.subr.mxu0 0.0
      %2159 = vmatpush2.xpose.msra.mxu0 0.0
      %2160 = vmatprep.subr.mxu0 0.0
      %2161 = vmatpush2.xpose.msra.mxu0 0.0
      %2162 = vmatprep.subr.mxu0 0.0
      %2163 = vmatpush2.xpose.msra.mxu0 0.0
      %2164 = vmatprep.subr.mxu0 0.0
      %2165 = vmatpush2.xpose.msra.mxu0 0.0
      %2166 = vmatprep.subr.mxu0 0.0
      %2167 = vmatpush2.xpose.msra.mxu0 0.0
      %2168 = vmatprep.subr.mxu0 0.0
      %2169 = vmatpush2.xpose.msra.mxu0 0.0
      %2170 = vmatprep.subr.mxu0 0.0
      %2171 = vmatpush2.xpose.msra.mxu0 0.0
      %2172 = vmatprep.subr.mxu0 0.0
      %2173 = vmatpush2.xpose.msra.mxu0 0.0
      %2174 = vmatprep.subr.mxu0 0.0
      %2175 = vmatpush2.xpose.msra.mxu0 0.0
      %2176 = vmatprep.subr.mxu0 0.0
      %2177 = vmatpush2.xpose.msra.mxu0 0.0
      %2178 = vmatprep.subr.mxu0 0.0
      %2179 = vmatpush2.xpose.msra.mxu0 0.0
      %2180 = vmatprep.subr.mxu0 0.0
      %2181 = vmatpush2.xpose.msra.mxu0 0.0
      %2182 = vmatprep.subr.mxu0 0.0
      %2183 = vmatpush2.xpose.msra.mxu0 0.0
      %2184 = vmatprep.mubr.f32.mxu0 0.0
      %2185 = vmatmul.mubr.f32.gmra.mxu0 %v2088
      %v2186 = vpop.f32.mrf.mxu0
      %v2187 = vadd.f32 0.0, %v2186
      %v2188 = vpop.f32.mrf.mxu0
      %2189 = vmatprep.mubr.f32.mxu0 0.0
      %2190 = vmatmul.mubr.f32.gmra.mxu0 %v2090
      %v2191 = vpop.f32.mrf.mxu0
      %v2192 = vadd.f32 0.0, %v2191
      %v2193 = vpop.f32.mrf.mxu0
      %2194 = vmatprep.mubr.f32.mxu0 0.0
      %2195 = vmatmul.mubr.f32.gmra.mxu0 %v2092
      %v2196 = vpop.f32.mrf.mxu0
      %v2197 = vadd.f32 0.0, %v2196
      %v2198 = vpop.f32.mrf.mxu0
      %2199 = vmatprep.mubr.f32.mxu0 0.0
      %2200 = vmatmul.mubr.f32.gmra.mxu0 %v2094
      %v2201 = vpop.f32.mrf.mxu0
      %v2202 = vadd.f32 0.0, %v2201
      %v2203 = vpop.f32.mrf.mxu0
      %2204 = vmatprep.mubr.f32.mxu0 0.0
      %2205 = vmatmul.mubr.f32.gmra.mxu0 %v2096
      %v2206 = vpop.f32.mrf.mxu0
      %v2207 = vadd.f32 0.0, %v2206
      %v2208 = vpop.f32.mrf.mxu0
      %2209 = vmatprep.mubr.f32.mxu0 0.0
      %2210 = vmatmul.mubr.f32.gmra.mxu0 %v2098
      %v2211 = vpop.f32.mrf.mxu0
      %v2212 = vadd.f32 0.0, %v2211
      %v2213 = vpop.f32.mrf.mxu0
      %2214 = vmatprep.mubr.f32.mxu0 0.0
      %2215 = vmatmul.mubr.f32.gmra.mxu0 %v2100
      %v2216 = vpop.f32.mrf.mxu0
      %v2217 = vadd.f32 0.0, %v2216
      %v2218 = vpop.f32.mrf.mxu0
      %2219 = vmatprep.mubr.f32.mxu0 0.0
      %2220 = vmatmul.mubr.f32.gmra.mxu0 %v2102
      %v2221 = vpop.f32.mrf.mxu0
      %v2222 = vadd.f32 0.0, %v2221
      %v2223 = vpop.f32.mrf.mxu0
      %2224 = vdwg.mxu0
      %v2225 = vsel %vm596, %v2187, -inf
      %2226 = vmax.xlane.f32.xlu0 %v2225
      %v2227 = vpop.xlane.xlu0 %2226
      %v2228 = vsel %vm596, %v2192, -inf
      %2229 = vmax.xlane.f32.xlu0 %v2228
      %v2230 = vpop.xlane.xlu0 %2229
      %v2231 = vsel %vm596, %v2197, -inf
      %2232 = vmax.xlane.f32.xlu0 %v2231
      %v2233 = vpop.xlane.xlu0 %2232
      %v2234 = vsel %vm596, %v2202, -inf
      %2235 = vmax.xlane.f32.xlu0 %v2234
      %v2236 = vpop.xlane.xlu0 %2235
      %v2237 = vsel %vm596, %v2207, -inf
      %2238 = vmax.xlane.f32.xlu0 %v2237
      %v2239 = vpop.xlane.xlu0 %2238
      %v2240 = vsel %vm596, %v2212, -inf
      %2241 = vmax.xlane.f32.xlu0 %v2240
      %v2242 = vpop.xlane.xlu0 %2241
      %v2243 = vsel %vm596, %v2217, -inf
      %2244 = vmax.xlane.f32.xlu0 %v2243
      %v2245 = vpop.xlane.xlu0 %2244
      %v2246 = vsel %vm596, %v2222, -inf
      %2247 = vmax.xlane.f32.xlu0 %v2246
      %v2248 = vpop.xlane.xlu0 %2247
      %v2249 = vsub.f32 %v2187, %v2227
      %v2250 = vsub.f32 %v2192, %v2230
      %v2251 = vsub.f32 %v2197, %v2233
      %v2252 = vsub.f32 %v2202, %v2236
      %v2253 = vsub.f32 %v2207, %v2239
      %v2254 = vsub.f32 %v2212, %v2242
      %v2255 = vsub.f32 %v2217, %v2245
      %v2256 = vsub.f32 %v2222, %v2248
      %v2257 = vmul.f32 %v2249, 1.442695
      %v2258 = vpow.pop %v2257
      %v2259 = vmul.f32 %v2250, 1.442695
      %v2260 = vpow.pop %v2259
      %v2261 = vmul.f32 %v2251, 1.442695
      %v2262 = vpow.pop %v2261
      %v2263 = vmul.f32 %v2252, 1.442695
      %v2264 = vpow.pop %v2263
      %v2265 = vmul.f32 %v2253, 1.442695
      %v2266 = vpow.pop %v2265
      %v2267 = vmul.f32 %v2254, 1.442695
      %v2268 = vpow.pop %v2267
      %v2269 = vmul.f32 %v2255, 1.442695
      %v2270 = vpow.pop %v2269
      %v2271 = vmul.f32 %v2256, 1.442695
      %v2272 = vpow.pop %v2271
      %v2273 = vsel %vm596, %v2258, 0.0
      %2274 = vadd.xlane.f32.xlu0 %v2273
      %v2275 = vpop.xlane.xlu0 %2274
      %v2276 = vsel %vm596, %v2260, 0.0
      %2277 = vadd.xlane.f32.xlu0 %v2276
      %v2278 = vpop.xlane.xlu0 %2277
      %v2279 = vsel %vm596, %v2262, 0.0
      %2280 = vadd.xlane.f32.xlu0 %v2279
      %v2281 = vpop.xlane.xlu0 %2280
      %v2282 = vsel %vm596, %v2264, 0.0
      %2283 = vadd.xlane.f32.xlu0 %v2282
      %v2284 = vpop.xlane.xlu0 %2283
      %v2285 = vsel %vm596, %v2266, 0.0
      %2286 = vadd.xlane.f32.xlu0 %v2285
      %v2287 = vpop.xlane.xlu0 %2286
      %v2288 = vsel %vm596, %v2268, 0.0
      %2289 = vadd.xlane.f32.xlu0 %v2288
      %v2290 = vpop.xlane.xlu0 %2289
      %v2291 = vsel %vm596, %v2270, 0.0
      %2292 = vadd.xlane.f32.xlu0 %v2291
      %v2293 = vpop.xlane.xlu0 %2292
      %v2294 = vsel %vm596, %v2272, 0.0
      %2295 = vadd.xlane.f32.xlu0 %v2294
      %v2296 = vpop.xlane.xlu0 %2295
      %v2297 = vrcp.pop %v2275
      %v2298 = vrcp.pop %v2278
      %v2299 = vrcp.pop %v2281
      %v2300 = vrcp.pop %v2284
      %v2301 = vrcp.pop %v2287
      %v2302 = vrcp.pop %v2290
      %v2303 = vrcp.pop %v2293
      %v2304 = vrcp.pop %v2296
      %v2305 = vmul.f32 %v2258, %v2297
      %v2306 = vmul.f32 %v2260, %v2298
      %v2307 = vmul.f32 %v2262, %v2299
      %v2308 = vmul.f32 %v2264, %v2300
      %v2309 = vmul.f32 %v2266, %v2301
      %v2310 = vmul.f32 %v2268, %v2302
      %v2311 = vmul.f32 %v2270, %v2303
      %v2312 = vmul.f32 %v2272, %v2304
      %2313 = vrot.lane.b32.xlu0 %v379, 40
      %v2314 = vpop.permute.xlu0 %2313
      %2315 = vrot.lane.b32.xlu0 %v384, 40
      %v2316 = vpop.permute.xlu0 %2315
      %2317 = vrot.lane.b32.xlu0 %v389, 40
      %v2318 = vpop.permute.xlu0 %2317
      %2319 = vrot.lane.b32.xlu0 %v394, 40
      %v2320 = vpop.permute.xlu0 %2319
      %2321 = vrot.lane.b32.xlu0 %v399, 40
      %v2322 = vpop.permute.xlu0 %2321
      %2323 = vrot.lane.b32.xlu0 %v404, 40
      %v2324 = vpop.permute.xlu0 %2323
      %2325 = vrot.lane.b32.xlu0 %v409, 40
      %v2326 = vpop.permute.xlu0 %2325
      %2327 = vrot.lane.b32.xlu0 %v414, 40
      %v2328 = vpop.permute.xlu0 %2327
      %v2338 = vsel %vm596, %v2305, 0
      %v2341 = vsel %vm596, %v2306, 0
      %v2344 = vsel %vm596, %v2307, 0
      %v2347 = vsel %vm596, %v2308, 0
      %v2350 = vsel %vm596, %v2309, 0
      %v2353 = vsel %vm596, %v2310, 0
      %v2356 = vsel %vm596, %v2311, 0
      %v2359 = vsel %vm596, %v2312, 0
      %2361 = vmatprep.subr.mxu0 0.0
      %2362 = vmatpush1.msra.mxu0 0.0
      %2363 = vmatprep.subr.mxu0 0.0
      %2364 = vmatpush1.msra.mxu0 0.0
      %2365 = vmatprep.subr.mxu0 0.0
      %2366 = vmatpush1.msra.mxu0 0.0
      %2367 = vmatprep.subr.mxu0 0.0
      %2368 = vmatpush1.msra.mxu0 0.0
      %2369 = vmatprep.subr.mxu0 0.0
      %2370 = vmatpush1.msra.mxu0 0.0
      %2371 = vmatprep.subr.mxu0 0.0
      %2372 = vmatpush1.msra.mxu0 0.0
      %2373 = vmatprep.subr.mxu0 0.0
      %2374 = vmatpush1.msra.mxu0 0.0
      %2375 = vmatprep.subr.mxu0 0.0
      %2376 = vmatpush1.msra.mxu0 0.0
      %2377 = vmatprep.subr.mxu0 0.0
      %2378 = vmatpush1.msra.mxu0 %v2328
      %2379 = vmatprep.subr.mxu0 0.0
      %2380 = vmatpush1.msra.mxu0 %v2326
      %2381 = vmatprep.subr.mxu0 0.0
      %2382 = vmatpush1.msra.mxu0 %v2324
      %2383 = vmatprep.subr.mxu0 0.0
      %2384 = vmatpush1.msra.mxu0 %v2322
      %2385 = vmatprep.subr.mxu0 0.0
      %2386 = vmatpush1.msra.mxu0 %v2320
      %2387 = vmatprep.subr.mxu0 0.0
      %2388 = vmatpush1.msra.mxu0 %v2318
      %2389 = vmatprep.subr.mxu0 0.0
      %2390 = vmatpush1.msra.mxu0 %v2316
      %2391 = vmatprep.subr.mxu0 0.0
      %2392 = vmatpush1.msra.mxu0 %v2314
      %2393 = vmatprep.subr.mxu0 0.0
      %2394 = vmatpush2.msra.mxu0 0.0
      %2395 = vmatprep.subr.mxu0 0.0
      %2396 = vmatpush2.msra.mxu0 0.0
      %2397 = vmatprep.subr.mxu0 0.0
      %2398 = vmatpush2.msra.mxu0 0.0
      %2399 = vmatprep.subr.mxu0 0.0
      %2400 = vmatpush2.msra.mxu0 0.0
      %2401 = vmatprep.subr.mxu0 0.0
      %2402 = vmatpush2.msra.mxu0 0.0
      %2403 = vmatprep.subr.mxu0 0.0
      %2404 = vmatpush2.msra.mxu0 0.0
      %2405 = vmatprep.subr.mxu0 0.0
      %2406 = vmatpush2.msra.mxu0 0.0
      %2407 = vmatprep.subr.mxu0 0.0
      %2408 = vmatpush2.msra.mxu0 0.0
      %2409 = vmatprep.subr.mxu0 0.0
      %2410 = vmatpush2.msra.mxu0 0.0
      %2411 = vmatprep.subr.mxu0 0.0
      %2412 = vmatpush2.msra.mxu0 0.0
      %2413 = vmatprep.subr.mxu0 0.0
      %2414 = vmatpush2.msra.mxu0 0.0
      %2415 = vmatprep.subr.mxu0 0.0
      %2416 = vmatpush2.msra.mxu0 0.0
      %2417 = vmatprep.subr.mxu0 0.0
      %2418 = vmatpush2.msra.mxu0 0.0
      %2419 = vmatprep.subr.mxu0 0.0
      %2420 = vmatpush2.msra.mxu0 0.0
      %2421 = vmatprep.subr.mxu0 0.0
      %2422 = vmatpush2.msra.mxu0 0.0
      %2423 = vmatprep.subr.mxu0 0.0
      %2424 = vmatpush2.msra.mxu0 0.0
      %2425 = vmatprep.mubr.f32.mxu0 0.0
      %2426 = vmatmul.mubr.f32.gmra.mxu0 %v2338
      %v2427 = vpop.f32.mrf.mxu0
      %v2428 = vadd.f32 0.0, %v2427
      %v2429 = vpop.f32.mrf.mxu0
      %2430 = vmatprep.mubr.f32.mxu0 0.0
      %2431 = vmatmul.mubr.f32.gmra.mxu0 %v2341
      %v2432 = vpop.f32.mrf.mxu0
      %v2433 = vadd.f32 0.0, %v2432
      %v2434 = vpop.f32.mrf.mxu0
      %2435 = vmatprep.mubr.f32.mxu0 0.0
      %2436 = vmatmul.mubr.f32.gmra.mxu0 %v2344
      %v2437 = vpop.f32.mrf.mxu0
      %v2438 = vadd.f32 0.0, %v2437
      %v2439 = vpop.f32.mrf.mxu0
      %2440 = vmatprep.mubr.f32.mxu0 0.0
      %2441 = vmatmul.mubr.f32.gmra.mxu0 %v2347
      %v2442 = vpop.f32.mrf.mxu0
      %v2443 = vadd.f32 0.0, %v2442
      %v2444 = vpop.f32.mrf.mxu0
      %2445 = vmatprep.mubr.f32.mxu0 0.0
      %2446 = vmatmul.mubr.f32.gmra.mxu0 %v2350
      %v2447 = vpop.f32.mrf.mxu0
      %v2448 = vadd.f32 0.0, %v2447
      %v2449 = vpop.f32.mrf.mxu0
      %2450 = vmatprep.mubr.f32.mxu0 0.0
      %2451 = vmatmul.mubr.f32.gmra.mxu0 %v2353
      %v2452 = vpop.f32.mrf.mxu0
      %v2453 = vadd.f32 0.0, %v2452
      %v2454 = vpop.f32.mrf.mxu0
      %2455 = vmatprep.mubr.f32.mxu0 0.0
      %2456 = vmatmul.mubr.f32.gmra.mxu0 %v2356
      %v2457 = vpop.f32.mrf.mxu0
      %v2458 = vadd.f32 0.0, %v2457
      %v2459 = vpop.f32.mrf.mxu0
      %2460 = vmatprep.mubr.f32.mxu0 0.0
      %2461 = vmatmul.mubr.f32.gmra.mxu0 %v2359
      %v2462 = vpop.f32.mrf.mxu0
      %v2463 = vadd.f32 0.0, %v2462
      %v2464 = vpop.f32.mrf.mxu0
      %2465 = vdwg.mxu0
      %v2466 = vld [vmem:[%s4 + $0x18] sm:$0xff]
      %v2468 = vsel %vm450, %v2428, 0
      %v2471 = vsel %vm450, %v2433, 0
      %v2474 = vsel %vm450, %v2438, 0
      %v2477 = vsel %vm450, %v2443, 0
      %v2480 = vsel %vm450, %v2448, 0
      %v2483 = vsel %vm450, %v2453, 0
      %v2486 = vsel %vm450, %v2458, 0
      %v2489 = vsel %vm450, %v2463, 0
      %2491 = vmatprep.subr.mxu0 0.0
      %2492 = vmatpush1.msra.mxu0 0.0
      %2493 = vmatprep.subr.mxu0 0.0
      %2494 = vmatpush1.msra.mxu0 0.0
      %2495 = vmatprep.subr.mxu0 0.0
      %2496 = vmatpush1.msra.mxu0 0.0
      %2497 = vmatprep.subr.mxu0 0.0
      %2498 = vmatpush1.msra.mxu0 0.0
      %2499 = vmatprep.subr.mxu0 0.0
      %2500 = vmatpush1.msra.mxu0 0.0
      %2501 = vmatprep.subr.mxu0 0.0
      %2502 = vmatpush1.msra.mxu0 0.0
      %2503 = vmatprep.subr.mxu0 0.0
      %2504 = vmatpush1.msra.mxu0 0.0
      %2505 = vmatprep.subr.mxu0 0.0
      %2506 = vmatpush1.msra.mxu0 0.0
      %2507 = vmatprep.subr.mxu0 0.0
      %2508 = vmatpush1.msra.mxu0 0.0
      %2509 = vmatprep.subr.mxu0 0.0
      %2510 = vmatpush1.msra.mxu0 0.0
      %2511 = vmatprep.subr.mxu0 0.0
      %2512 = vmatpush1.msra.mxu0 0.0
      %2513 = vmatprep.subr.mxu0 0.0
      %2514 = vmatpush1.msra.mxu0 0.0
      %2515 = vmatprep.subr.mxu0 0.0
      %2516 = vmatpush1.msra.mxu0 0.0
      %2517 = vmatprep.subr.mxu0 0.0
      %2518 = vmatpush1.msra.mxu0 0.0
      %2519 = vmatprep.subr.mxu0 0.0
      %2520 = vmatpush1.msra.mxu0 0.0
      %2521 = vmatprep.subr.mxu0 0.0
      %2522 = vmatpush1.msra.mxu0 %v2466
      %2523 = vmatprep.subr.mxu0 0.0
      %2524 = vmatpush2.msra.mxu0 0.0
      %2525 = vmatprep.subr.mxu0 0.0
      %2526 = vmatpush2.msra.mxu0 0.0
      %2527 = vmatprep.subr.mxu0 0.0
      %2528 = vmatpush2.msra.mxu0 0.0
      %2529 = vmatprep.subr.mxu0 0.0
      %2530 = vmatpush2.msra.mxu0 0.0
      %2531 = vmatprep.subr.mxu0 0.0
      %2532 = vmatpush2.msra.mxu0 0.0
      %2533 = vmatprep.subr.mxu0 0.0
      %2534 = vmatpush2.msra.mxu0 0.0
      %2535 = vmatprep.subr.mxu0 0.0
      %2536 = vmatpush2.msra.mxu0 0.0
      %2537 = vmatprep.subr.mxu0 0.0
      %2538 = vmatpush2.msra.mxu0 0.0
      %2539 = vmatprep.subr.mxu0 0.0
      %2540 = vmatpush2.msra.mxu0 0.0
      %2541 = vmatprep.subr.mxu0 0.0
      %2542 = vmatpush2.msra.mxu0 0.0
      %2543 = vmatprep.subr.mxu0 0.0
      %2544 = vmatpush2.msra.mxu0 0.0
      %2545 = vmatprep.subr.mxu0 0.0
      %2546 = vmatpush2.msra.mxu0 0.0
      %2547 = vmatprep.subr.mxu0 0.0
      %2548 = vmatpush2.msra.mxu0 0.0
      %2549 = vmatprep.subr.mxu0 0.0
      %2550 = vmatpush2.msra.mxu0 0.0
      %2551 = vmatprep.subr.mxu0 0.0
      %2552 = vmatpush2.msra.mxu0 0.0
      %2553 = vmatprep.subr.mxu0 0.0
      %2554 = vmatpush2.msra.mxu0 0.0
      %2555 = vmatprep.mubr.f32.mxu0 0.0
      %2556 = vmatmul.mubr.f32.gmra.mxu0 %v2468
      %v2557 = vpop.f32.mrf.mxu0
      %v2558 = vadd.f32 0.0, %v2557
      %v2559 = vpop.f32.mrf.mxu0
      %2560 = vmatprep.mubr.f32.mxu0 0.0
      %2561 = vmatmul.mubr.f32.gmra.mxu0 %v2471
      %v2562 = vpop.f32.mrf.mxu0
      %v2563 = vadd.f32 0.0, %v2562
      %v2564 = vpop.f32.mrf.mxu0
      %2565 = vmatprep.mubr.f32.mxu0 0.0
      %2566 = vmatmul.mubr.f32.gmra.mxu0 %v2474
      %v2567 = vpop.f32.mrf.mxu0
      %v2568 = vadd.f32 0.0, %v2567
      %v2569 = vpop.f32.mrf.mxu0
      %2570 = vmatprep.mubr.f32.mxu0 0.0
      %2571 = vmatmul.mubr.f32.gmra.mxu0 %v2477
      %v2572 = vpop.f32.mrf.mxu0
      %v2573 = vadd.f32 0.0, %v2572
      %v2574 = vpop.f32.mrf.mxu0
      %2575 = vmatprep.mubr.f32.mxu0 0.0
      %2576 = vmatmul.mubr.f32.gmra.mxu0 %v2480
      %v2577 = vpop.f32.mrf.mxu0
      %v2578 = vadd.f32 0.0, %v2577
      %v2579 = vpop.f32.mrf.mxu0
      %2580 = vmatprep.mubr.f32.mxu0 0.0
      %2581 = vmatmul.mubr.f32.gmra.mxu0 %v2483
      %v2582 = vpop.f32.mrf.mxu0
      %v2583 = vadd.f32 0.0, %v2582
      %v2584 = vpop.f32.mrf.mxu0
      %2585 = vmatprep.mubr.f32.mxu0 0.0
      %2586 = vmatmul.mubr.f32.gmra.mxu0 %v2486
      %v2587 = vpop.f32.mrf.mxu0
      %v2588 = vadd.f32 0.0, %v2587
      %v2589 = vpop.f32.mrf.mxu0
      %2590 = vmatprep.mubr.f32.mxu0 0.0
      %2591 = vmatmul.mubr.f32.gmra.mxu0 %v2489
      %v2592 = vpop.f32.mrf.mxu0
      %v2593 = vadd.f32 0.0, %v2592
      %v2594 = vpop.f32.mrf.mxu0
      %2595 = vdwg.mxu0
      %v2596 = vadd.f32 %v2048, %v2558
      %v2597 = vadd.f32 %v2049, %v2563
      %v2598 = vadd.f32 %v2050, %v2568
      %v2599 = vadd.f32 %v2051, %v2573
      %v2600 = vadd.f32 %v2052, %v2578
      %v2601 = vadd.f32 %v2053, %v2583
      %v2602 = vadd.f32 %v2054, %v2588
      %v2603 = vadd.f32 %v2055, %v2593
      %v2605 = vlaneseq
      %v2606 = vshrl.u32 %v2605, 7
      %v2607 = vsub.s32 0, %v2606
      %v2608 = vrot.slane %v417, %v2607
      %v2610 = vadd.f32 %v2596, %v2608
      %v2611 = vadd.f32 %v2597, %v2608
      %v2612 = vadd.f32 %v2598, %v2608
      %v2613 = vadd.f32 %v2599, %v2608
      %v2614 = vadd.f32 %v2600, %v2608
      %v2615 = vadd.f32 %v2601, %v2608
      %v2616 = vadd.f32 %v2602, %v2608
      %v2617 = vadd.f32 %v2603, %v2608
      %2618 = vst.msk [vmem:[%s251] sm:$0xff] %vm287, %v2610
      %2619 = vst.msk [vmem:[%s251 + $0x8] sm:$0xff] %vm287, %v2611
      %2620 = vst.msk [vmem:[%s251 + $0x10] sm:$0xff] %vm287, %v2612
      %2621 = vst.msk [vmem:[%s251 + $0x18] sm:$0xff] %vm287, %v2613
      %2622 = vst.msk [vmem:[%s251 + $0x20] sm:$0xff] %vm287, %v2614
      %2623 = vst.msk [vmem:[%s251 + $0x28] sm:$0xff] %vm287, %v2615
      %2624 = vst.msk [vmem:[%s251 + $0x30] sm:$0xff] %vm287, %v2616
      %2625 = vst.msk [vmem:[%s251 + $0x38] sm:$0xff] %vm287, %v2617
      %p2626 = scmp.lt.s32.totalorder %s17, 1
      %s2627 = scalar_select %p2626, %s17, 1
      %s2628 = smul.addr %s2627, 8
      %s2629 = smul.addr %s2628, 8
      %s2630 = scalar_lea.vmem %s6, %s2629
      // Predicated region
      $region45: #{tpu_custom_call.1} parent=43 // pred_check
        %p2631 = pneg %p166
      $region46: #{tpu_custom_call.1} parent=43 // pred_check_branch
        %2633 = sbr.rel (%p2631) target = $region48
      $region47: #{tpu_custom_call.1} parent=43 // pred_region
        _
      $region48: #{tpu_custom_call.1} parent=43 // pred_fallthru
        _
    $region44: #{tpu_custom_call.1} parent=5 // pred_fallthru
      _
    %p2634 = scmp.le.s32.totalorder 2, %s12
    // Predicated region
    $region49: #{tpu_custom_call.1} parent=5 // pred_check
      %p2635 = pneg %p2634
    $region50: #{tpu_custom_call.1} parent=5 // pred_check_branch
      %2637 = sbr.rel (%p2635) target = $region52
    $region51: #{tpu_custom_call.1} parent=5 // pred_region
      %s2638 = ssub.s32 %s12, 2
      // Predicated region
      $region53: #{tpu_custom_call.1} parent=51 // pred_check
        %p2639 = pneg %p172
      $region54: #{tpu_custom_call.1} parent=51 // pred_check_branch
        %2641 = sbr.rel (%p2639) target = $region56
      $region55: #{tpu_custom_call.1} parent=51 // pred_region
        %p2642 = scmp.lt.s32.totalorder %s18, 1
        %s2643 = scalar_select %p2642, %s18, 1
        %s2644 = smul.addr %s2643, 8
        %s2645 = smul.addr %s2644, 8
        %s2646 = scalar_lea.vmem %s6, %s2645
      $region56: #{tpu_custom_call.1} parent=51 // pred_fallthru
        _
    $region52: #{tpu_custom_call.1} parent=5 // pred_fallthru
      _
  $region6: #{tpu_custom_call.1} parent=0 // loop_footer
    %s16 = sadd.s32 1, %s12
  $region7: #{tpu_custom_call.1} parent=0 // loop_footer_branch
    %11 = sbr.rel target = $region3
  $region8: #{tpu_custom_call.1} parent=0 // loop_exit
    _

</llo_original>
